<compile_context>
chip_gen: v5e
topology: v5e:2x2
jax: 0.10.0
libtpu: 0.0.40
codegen_flags: <defaults>
</compile_context>

<pallas_src>
from functools import partial

import jax
import jax.numpy as jnp
from jax import lax
from jax.experimental import pallas as pl
from jax.experimental.pallas import tpu as pltpu

_VMEM_LIMIT = 48 * 1024 * 1024  # explicit scoped-VMEM cap (fits v7x 64 MiB)


def _pick_row_tile(n_rows, max_tile=512):
    """Largest divisor of n_rows that is a multiple of 8 and <= max_tile."""
    if n_rows <= max_tile:
        return n_rows
    for t in range(max_tile - max_tile % 8, 7, -8):
        if n_rows % t == 0:
            return t
    return n_rows


def _phase_conv_stats_kernel(x_ref, w_ref, b_ref, y_ref, stat_ref, slab_ref,
                             *, Wp0, W0, HWp, cin):
    """Fused 2x-upsample + (3x3 || 5x5) conv for one (batch, row-tile) step.

    Rows = (phase_y, phase_x, cout).  Builds a 9-tap im2col slab once per
    batch (row-tile 0), then does a single MXU matmul with K = 9*cin, adds
    bias, stores the lane-dense y tile and packed BN partial stats."""
    r = pl.program_id(1)

    @pl.when(r == 0)                              # scratch persists across row tiles
    def _build_im2col():
        xf = x_ref[0]                             # (cin, L0) flattened, padded
        for t in range(9):                        # 9 static lane-shifted copies
            u, v = divmod(t, 3)
            off = u * Wp0 + v
            slab_ref[t * cin:(t + 1) * cin, :] = xf[:, off:off + HWp]

    # One deep matmul: (r_tile, 9*cin) @ (9*cin, HWp) -> f32 accumulate on MXU.
    acc = jnp.dot(w_ref[...], slab_ref[...], preferred_element_type=jnp.float32)
    acc = acc + b_ref[...]                        # (r_tile, 1) bias broadcast
    y_ref[0] = acc                                # lane-dense store

    # BN partial stats over valid columns (j < W0 inside each Wp0-wide row);
    # mask generated in-kernel, no DMA.
    valid = (lax.broadcasted_iota(jnp.int32, (1, HWp), 1) % Wp0) < W0
    masked = acc * valid.astype(jnp.float32)
    s = jnp.sum(masked, axis=1, keepdims=True)          # sum
    sq = jnp.sum(masked * acc, axis=1, keepdims=True)   # sum of squares (mask is 0/1)
    stat_ref[0] = jnp.concatenate([s, sq], axis=1)      # (r_tile, 2) packed


def _bn_relu_kernel(y_ref, scale_ref, shift_ref, o_ref):
    """Elementwise y*scale + shift then ReLU (scale/shift precomputed)."""
    o_ref[0] = jnp.maximum(y_ref[0] * scale_ref[...] + shift_ref[...], 0.0)


def up_conv_forward(x_nchw, w3, b3, w5, b5, gamma, beta,
                    eps=1e-5, matmul_dtype=jnp.float32):
    """Forward pass equivalent to the PyTorch up_conv module.

    x_nchw : (N, Cin, H0, W0) float32
    w3     : (3, 3, Cin, Cout//2) HWIO,  b3 : (Cout//2,)
    w5     : (5, 5, Cin, Cout//2) HWIO,  b5 : (Cout//2,)
    gamma, beta : (Cout,)
    returns (N, Cout, 2*H0, 2*W0)
    """
    N, Cin, H0, W0 = x_nchw.shape
    Co2 = w3.shape[-1]
    Cout = 2 * Co2
    n_rows = 4 * Cout                   # rows ordered (phase_y, phase_x, cout)
    Wp0 = W0 + 2                        # 1-pixel halo each side
    HWp = H0 * Wp0
    L0 = (H0 + 3) * Wp0                 # extra bottom rows for flattened-slab taps
    Cin_p = -(-Cin // 8) * 8            # pad channels -> sublane-aligned tap blocks

    # ---- weight prep (tiny, wrapper-side) -------------------------------
    w3p = jnp.pad(w3, ((1, 1), (1, 1), (0, 0), (0, 0)))     # zero-ring 3x3 -> 5x5
    w55 = jnp.concatenate([w3p, w5], axis=-1)               # (5, 5, Cin, Cout)
    w55 = jnp.pad(w55, ((0, 0), (0, 0), (0, Cin_p - Cin), (0, 0)))

    # Collapse the 5x5 taps (on the 2x-upsampled grid) into four 3x3 phase
    # kernels on the original grid:
    #   y[2i+py, 2j+px] = sum_{u,v} Wph[py,px,u,v] * x[i+u-1, j+v-1]
    A = jnp.array([[[1, 1, 0, 0, 0], [0, 0, 1, 1, 0], [0, 0, 0, 0, 1]],
                   [[1, 0, 0, 0, 0], [0, 1, 1, 0, 0], [0, 0, 0, 1, 1]]],
                  jnp.float32)                               # [phase, U, dy]
    wk = jnp.einsum('pud,qvx,dxio->uvpqoi', A, A, w55)       # (3,3,2,2,Cout,Cin_p)
    wk = wk.reshape(9, n_rows, Cin_p)
    # Weight-stationary layout matching the im2col slab rows (t*Cin_p + c):
    wflat = wk.transpose(1, 0, 2).reshape(n_rows, 9 * Cin_p)

    bias = jnp.concatenate([b3, b5])
    bias4 = jnp.tile(bias, 4).reshape(n_rows, 1)

    # ---- input prep: pad channels + 1-px halo (+slack rows), flatten ----
    xpad = jnp.pad(x_nchw, ((0, 0), (0, Cin_p - Cin), (1, 2), (1, 1)))
    xflat = xpad.reshape(N, Cin_p, L0)

    r_tile = _pick_row_tile(n_rows)
    R = n_rows // r_tile

    # ---- kernel 1: fused upsample+conv (all 4 phases) + BN partial stats ----
    y, stats = pl.pallas_call(
        partial(_phase_conv_stats_kernel, Wp0=Wp0, W0=W0, HWp=HWp, cin=Cin_p),
        grid=(N, R),
        in_specs=[
            pl.BlockSpec((1, Cin_p, L0), lambda b, r: (b, 0, 0)),
            pl.BlockSpec((r_tile, 9 * Cin_p), lambda b, r: (r, 0)),
            pl.BlockSpec((r_tile, 1), lambda b, r: (r, 0)),
        ],
        out_specs=[
            pl.BlockSpec((1, r_tile, HWp), lambda b, r: (b, r, 0)),
            pl.BlockSpec((1, r_tile, 2), lambda b, r: (b, r, 0)),
        ],
        out_shape=[
            jax.ShapeDtypeStruct((N, n_rows, HWp), jnp.float32),
            jax.ShapeDtypeStruct((N, n_rows, 2), jnp.float32),
        ],
        scratch_shapes=[pltpu.VMEM((9 * Cin_p, HWp), matmul_dtype)],
        compiler_params=pltpu.CompilerParams(
            dimension_semantics=("parallel", "arbitrary"),
            vmem_limit_bytes=_VMEM_LIMIT),
    )(xflat.astype(matmul_dtype), wflat.astype(matmul_dtype), bias4)

    # ---- BN: reduce per-batch partials, fold into per-channel scale/shift ----
    count = float(N) * 4.0 * H0 * W0                 # == N * (2*H0) * (2*W0)
    per_c = stats.reshape(N, 4, Cout, 2).sum(axis=(0, 1))     # (Cout, 2)
    mean = per_c[:, 0] / count
    var = jnp.maximum(per_c[:, 1] / count - mean * mean, 0.0)  # biased (training BN)
    scale = gamma * lax.rsqrt(var + eps)
    shift = beta - mean * scale
    scale4 = jnp.tile(scale, 4).reshape(n_rows, 1)
    shift4 = jnp.tile(shift, 4).reshape(n_rows, 1)

    # ---- kernel 2: tiled fma + relu, in place on y ----
    z = pl.pallas_call(
        _bn_relu_kernel,
        grid=(N, R),
        in_specs=[
            pl.BlockSpec((1, r_tile, HWp), lambda b, r: (b, r, 0)),
            pl.BlockSpec((r_tile, 1), lambda b, r: (r, 0)),
            pl.BlockSpec((r_tile, 1), lambda b, r: (r, 0)),
        ],
        out_specs=pl.BlockSpec((1, r_tile, HWp), lambda b, r: (b, r, 0)),
        out_shape=jax.ShapeDtypeStruct((N, n_rows, HWp), jnp.float32),
        input_output_aliases={0: 0},
        compiler_params=pltpu.CompilerParams(
            dimension_semantics=("parallel", "parallel"),
            vmem_limit_bytes=_VMEM_LIMIT),
    )(y, scale4, shift4)

    # ---- de-interleave the 4 upsample phases, drop slack columns -> NCHW ----
    out = z.reshape(N, 2, 2, Cout, H0, Wp0)[..., :W0]        # (n, py, px, c, i, j)
    out = out.transpose(0, 3, 4, 1, 5, 2).reshape(N, Cout, 2 * H0, 2 * W0)
    return out


def up_conv_ref(x_nchw, w3, b3, w5, b5, gamma, beta, eps=1e-5):
    """Pure-JAX reference for correctness checking."""
    x = jnp.transpose(x_nchw, (0, 2, 3, 1))
    x = jnp.repeat(jnp.repeat(x, 2, axis=1), 2, axis=2)       # nearest 2x upsample
    dn = jax.lax.conv_dimension_numbers(x.shape, w3.shape, ('NHWC', 'HWIO', 'NHWC'))
    y1 = jax.lax.conv_general_dilated(x, w3, (1, 1), ((1, 1), (1, 1)),
                                      dimension_numbers=dn) + b3
    y2 = jax.lax.conv_general_dilated(x, w5, (1, 1), ((2, 2), (2, 2)),
                                      dimension_numbers=dn) + b5
    y = jnp.concatenate([y1, y2], axis=-1)
    mean = jnp.mean(y, axis=(0, 1, 2))
    var = jnp.var(y, axis=(0, 1, 2))
    y = jnp.maximum((y - mean) * jax.lax.rsqrt(var + eps) * gamma + beta, 0.0)
    return jnp.transpose(y, (0, 3, 1, 2))


if __name__ == "__main__":
    N, ch_in, ch_out, H0, W0 = 2, 4, 8, 16, 16
    co2 = ch_out // 2

    key = jax.random.PRNGKey(0)
    k = jax.random.split(key, 5)
    x = jax.random.normal(k[0], (N, ch_in, H0, W0), jnp.float32)
    w3 = jax.random.normal(k[1], (3, 3, ch_in, co2), jnp.float32) * 0.1
    b3 = jax.random.normal(k[2], (co2,), jnp.float32) * 0.1
    w5 = jax.random.normal(k[3], (5, 5, ch_in, co2), jnp.float32) * 0.1
    b5 = jax.random.normal(k[4], (co2,), jnp.float32) * 0.1
    gamma = jnp.ones((ch_out,), jnp.float32)   # fresh nn.BatchNorm2d init
    beta = jnp.zeros((ch_out,), jnp.float32)

    fwd = jax.jit(up_conv_forward)
    out = fwd(x, w3, b3, w5, b5, gamma, beta)
    out = jax.block_until_ready(out)

    assert out.shape == (N, ch_out, 2 * H0, 2 * W0), out.shape
    ref = up_conv_ref(x, w3, b3, w5, b5, gamma, beta)
    max_err = float(jnp.max(jnp.abs(out - ref)))
    assert jnp.allclose(out, ref, atol=2e-3, rtol=2e-3), max_err

    print("KERNEL_OK")
</pallas_src>

<mosaic_0001>
module attributes {stable_mosaic.version = 11 : i64} {
  func.func @_phase_conv_stats_kernel(%arg0: i32, %arg1: i32, %arg2: memref<1x8x342xf32, #tpu.memory_space<vmem>>, %arg3: memref<32x72xf32, #tpu.memory_space<vmem>>, %arg4: memref<32x1xf32, #tpu.memory_space<vmem>>, %arg5: memref<1x32x288xf32, #tpu.memory_space<vmem>>, %arg6: memref<1x32x2xf32, #tpu.memory_space<vmem>>, %arg7: memref<72x288xf32, #tpu.memory_space<vmem>>) attributes {dimension_semantics = [#tpu.dimension_semantics<parallel>, #tpu.dimension_semantics<arbitrary>], iteration_bounds = array<i64: 2, 1>, scalar_prefetch = 0 : i64, scratch_operands = 1 : i64, tpu.core_type = #tpu.core_type<tc>, window_params = [{transform_indices = @transform_0, window_bounds = array<i64: 1, 8, 342>}, {transform_indices = @transform_1, window_bounds = array<i64: 32, 72>}, {transform_indices = @transform_2, window_bounds = array<i64: 32, 1>}, {transform_indices = @transform_3, window_bounds = array<i64: 1, 32, 288>}, {transform_indices = @transform_4, window_bounds = array<i64: 1, 32, 2>}]} {
    %c0_i32 = arith.constant 0 : i32
    %0 = arith.cmpi eq, %arg1, %c0_i32 : i32
    %1 = arith.extui %0 : i1 to i32
    %c0_i32_0 = arith.constant 0 : i32
    %2 = arith.cmpi ne, %1, %c0_i32_0 : i32
    scf.if %2 {
      %c0_18 = arith.constant 0 : index
      %c0_19 = arith.constant 0 : index
      %c0_20 = arith.constant 0 : index
      %44 = vector.load %arg2[%c0_18, %c0_19, %c0_20] : memref<1x8x342xf32, #tpu.memory_space<vmem>>, vector<1x8x342xf32>
      %45 = vector.shape_cast %44 : vector<1x8x342xf32> to vector<8x342xf32>
      %46 = vector.extract_strided_slice %45 {offsets = [0, 0], sizes = [8, 288], strides = [1, 1]} : vector<8x342xf32> to vector<8x288xf32>
      %c0_21 = arith.constant 0 : index
      %c0_22 = arith.constant 0 : index
      %47 = vector.load %arg7[%c0_21, %c0_22] : memref<72x288xf32, #tpu.memory_space<vmem>>, vector<8x288xf32>
      tpu.vector_store %arg7[%c0_21, %c0_22], %46 {strides = array<i32>} : memref<72x288xf32, #tpu.memory_space<vmem>>, vector<8x288xf32>,
      %48 = vector.extract_strided_slice %45 {offsets = [0, 1], sizes = [8, 288], strides = [1, 1]} : vector<8x342xf32> to vector<8x288xf32>
      %c8 = arith.constant 8 : index
      %c0_23 = arith.constant 0 : index
      %49 = vector.load %arg7[%c8, %c0_23] : memref<72x288xf32, #tpu.memory_space<vmem>>, vector<8x288xf32>
      tpu.vector_store %arg7[%c8, %c0_23], %48 {strides = array<i32>} : memref<72x288xf32, #tpu.memory_space<vmem>>, vector<8x288xf32>,
      %50 = vector.extract_strided_slice %45 {offsets = [0, 2], sizes = [8, 288], strides = [1, 1]} : vector<8x342xf32> to vector<8x288xf32>
      %c16 = arith.constant 16 : index
      %c0_24 = arith.constant 0 : index
      %51 = vector.load %arg7[%c16, %c0_24] : memref<72x288xf32, #tpu.memory_space<vmem>>, vector<8x288xf32>
      tpu.vector_store %arg7[%c16, %c0_24], %50 {strides = array<i32>} : memref<72x288xf32, #tpu.memory_space<vmem>>, vector<8x288xf32>,
      %52 = vector.extract_strided_slice %45 {offsets = [0, 18], sizes = [8, 288], strides = [1, 1]} : vector<8x342xf32> to vector<8x288xf32>
      %c24 = arith.constant 24 : index
      %c0_25 = arith.constant 0 : index
      %53 = vector.load %arg7[%c24, %c0_25] : memref<72x288xf32, #tpu.memory_space<vmem>>, vector<8x288xf32>
      tpu.vector_store %arg7[%c24, %c0_25], %52 {strides = array<i32>} : memref<72x288xf32, #tpu.memory_space<vmem>>, vector<8x288xf32>,
      %54 = vector.extract_strided_slice %45 {offsets = [0, 19], sizes = [8, 288], strides = [1, 1]} : vector<8x342xf32> to vector<8x288xf32>
      %c32 = arith.constant 32 : index
      %c0_26 = arith.constant 0 : index
      %55 = vector.load %arg7[%c32, %c0_26] : memref<72x288xf32, #tpu.memory_space<vmem>>, vector<8x288xf32>
      tpu.vector_store %arg7[%c32, %c0_26], %54 {strides = array<i32>} : memref<72x288xf32, #tpu.memory_space<vmem>>, vector<8x288xf32>,
      %56 = vector.extract_strided_slice %45 {offsets = [0, 20], sizes = [8, 288], strides = [1, 1]} : vector<8x342xf32> to vector<8x288xf32>
      %c40 = arith.constant 40 : index
      %c0_27 = arith.constant 0 : index
      %57 = vector.load %arg7[%c40, %c0_27] : memref<72x288xf32, #tpu.memory_space<vmem>>, vector<8x288xf32>
      tpu.vector_store %arg7[%c40, %c0_27], %56 {strides = array<i32>} : memref<72x288xf32, #tpu.memory_space<vmem>>, vector<8x288xf32>,
      %58 = vector.extract_strided_slice %45 {offsets = [0, 36], sizes = [8, 288], strides = [1, 1]} : vector<8x342xf32> to vector<8x288xf32>
      %c48 = arith.constant 48 : index
      %c0_28 = arith.constant 0 : index
      %59 = vector.load %arg7[%c48, %c0_28] : memref<72x288xf32, #tpu.memory_space<vmem>>, vector<8x288xf32>
      tpu.vector_store %arg7[%c48, %c0_28], %58 {strides = array<i32>} : memref<72x288xf32, #tpu.memory_space<vmem>>, vector<8x288xf32>,
      %60 = vector.extract_strided_slice %45 {offsets = [0, 37], sizes = [8, 288], strides = [1, 1]} : vector<8x342xf32> to vector<8x288xf32>
      %c56 = arith.constant 56 : index
      %c0_29 = arith.constant 0 : index
      %61 = vector.load %arg7[%c56, %c0_29] : memref<72x288xf32, #tpu.memory_space<vmem>>, vector<8x288xf32>
      tpu.vector_store %arg7[%c56, %c0_29], %60 {strides = array<i32>} : memref<72x288xf32, #tpu.memory_space<vmem>>, vector<8x288xf32>,
      %62 = vector.extract_strided_slice %45 {offsets = [0, 38], sizes = [8, 288], strides = [1, 1]} : vector<8x342xf32> to vector<8x288xf32>
      %c64 = arith.constant 64 : index
      %c0_30 = arith.constant 0 : index
      %63 = vector.load %arg7[%c64, %c0_30] : memref<72x288xf32, #tpu.memory_space<vmem>>, vector<8x288xf32>
      tpu.vector_store %arg7[%c64, %c0_30], %62 {strides = array<i32>} : memref<72x288xf32, #tpu.memory_space<vmem>>, vector<8x288xf32>,
    } else {
    }
    %c0 = arith.constant 0 : index
    %c0_1 = arith.constant 0 : index
    %3 = vector.load %arg3[%c0, %c0_1] : memref<32x72xf32, #tpu.memory_space<vmem>>, vector<32x72xf32>
    %c0_2 = arith.constant 0 : index
    %c0_3 = arith.constant 0 : index
    %4 = vector.load %arg7[%c0_2, %c0_3] : memref<72x288xf32, #tpu.memory_space<vmem>>, vector<72x288xf32>
    %cst = arith.constant dense<0.000000e+00> : vector<32x288xf32>
    %5 = tpu.matmul %3, %4, %cst {dimension_numbers = #tpu.dot_dimension_numbers<[1], [0], [0], [1], [0, 0, 1, 1], [], []>} : vector<32x72xf32>, vector<72x288xf32>, vector<32x288xf32> -> vector<32x288xf32>
    %c0_4 = arith.constant 0 : index
    %c0_5 = arith.constant 0 : index
    %6 = vector.load %arg4[%c0_4, %c0_5] : memref<32x1xf32, #tpu.memory_space<vmem>>, vector<32x1xf32>
    %7 = vector.broadcast %6 : vector<32x1xf32> to vector<32x288xf32>
    %8 = arith.addf %5, %7 : vector<32x288xf32>
    %c0_6 = arith.constant 0 : index
    %c0_7 = arith.constant 0 : index
    %c0_8 = arith.constant 0 : index
    %9 = vector.load %arg5[%c0_6, %c0_7, %c0_8] : memref<1x32x288xf32, #tpu.memory_space<vmem>>, vector<1x32x288xf32>
    %10 = vector.shape_cast %9 : vector<1x32x288xf32> to vector<32x288xf32>
    %11 = vector.shape_cast %8 : vector<32x288xf32> to vector<1x32x288xf32>
    tpu.vector_store %arg5[%c0_6, %c0_7, %c0_8], %11 {strides = array<i32>} : memref<1x32x288xf32, #tpu.memory_space<vmem>>, vector<1x32x288xf32>,
    %12 = tpu.iota {dimensions = array<i32: 1>} : vector<1x288xi32>
    %c18_i32 = arith.constant 18 : i32
    %c0_i32_9 = arith.constant 0 : i32
    %13 = arith.cmpi eq, %c18_i32, %c0_i32_9 : i32
    %c1_i32 = arith.constant 1 : i32
    %14 = arith.select %13, %c1_i32, %c18_i32 : i32
    %15 = vector.broadcast %14 : i32 to vector<1x288xi32>
    %16 = arith.remsi %12, %15 : vector<1x288xi32>
    %c0_i32_10 = arith.constant 0 : i32
    %17 = vector.broadcast %c0_i32_10 : i32 to vector<1x288xi32>
    %18 = arith.cmpi ne, %16, %17 : vector<1x288xi32>
    %c0_i32_11 = arith.constant 0 : i32
    %19 = vector.broadcast %c0_i32_11 : i32 to vector<1x288xi32>
    %20 = arith.cmpi slt, %16, %19 : vector<1x288xi32>
    %c0_i32_12 = arith.constant 0 : i32
    %21 = arith.cmpi slt, %14, %c0_i32_12 : i32
    %22 = vector.broadcast %21 : i1 to vector<1x288xi1>
    %23 = vector.broadcast %22 : vector<1x288xi1> to vector<1x288xi1>
    %24 = arith.xori %20, %23 : vector<1x288xi1>
    %25 = arith.andi %24, %18 : vector<1x288xi1>
    %26 = vector.broadcast %14 : i32 to vector<1x288xi32>
    %27 = arith.addi %16, %26 : vector<1x288xi32>
    %28 = arith.select %25, %27, %16 : vector<1x288xi1>, vector<1x288xi32>
    %c16_i32 = arith.constant 16 : i32
    %29 = vector.broadcast %c16_i32 : i32 to vector<1x288xi32>
    %30 = arith.cmpi slt, %28, %29 : vector<1x288xi32>
    %31 = arith.extui %30 : vector<1x288xi1> to vector<1x288xi32>
    %32 = arith.sitofp %31 : vector<1x288xi32> to vector<1x288xf32>
    %33 = vector.broadcast %32 : vector<1x288xf32> to vector<32x288xf32>
    %34 = arith.mulf %8, %33 : vector<32x288xf32>
    %cst_13 = arith.constant dense<0.000000e+00> : vector<32xf32>
    %35 = vector.multi_reduction <add>, %34, %cst_13 [1] : vector<32x288xf32> to vector<32xf32>
    %36 = vector.shape_cast %35 : vector<32xf32> to vector<32x1xf32>
    %37 = arith.mulf %34, %8 : vector<32x288xf32>
    %cst_14 = arith.constant dense<0.000000e+00> : vector<32xf32>
    %38 = vector.multi_reduction <add>, %37, %cst_14 [1] : vector<32x288xf32> to vector<32xf32>
    %39 = vector.shape_cast %38 : vector<32xf32> to vector<32x1xf32>
    %40 = tpu.concatenate %36, %39 in 1 : vector<32x1xf32>, vector<32x1xf32> -> vector<32x2xf32>
    %c0_15 = arith.constant 0 : index
    %c0_16 = arith.constant 0 : index
    %c0_17 = arith.constant 0 : index
    %41 = vector.load %arg6[%c0_15, %c0_16, %c0_17] : memref<1x32x2xf32, #tpu.memory_space<vmem>>, vector<1x32x2xf32>
    %42 = vector.shape_cast %41 : vector<1x32x2xf32> to vector<32x2xf32>
    %43 = vector.shape_cast %40 : vector<32x2xf32> to vector<1x32x2xf32>
    tpu.vector_store %arg6[%c0_15, %c0_16, %c0_17], %43 {strides = array<i32>} : memref<1x32x2xf32, #tpu.memory_space<vmem>>, vector<1x32x2xf32>,
    return
  }
  func.func @transform_0(%arg0: i32, %arg1: i32) -> (i32, i32, i32) {
    %c0_i32 = arith.constant 0 : i32
    %c0_i32_0 = arith.constant 0 : i32
    %c0_i32_1 = arith.constant 0 : i32
    return %arg0, %c0_i32, %c0_i32_0 : i32, i32, i32
  }
  func.func @transform_1(%arg0: i32, %arg1: i32) -> (i32, i32) {
    %c0_i32 = arith.constant 0 : i32
    %c0_i32_0 = arith.constant 0 : i32
    return %arg1, %c0_i32 : i32, i32
  }
  func.func @transform_2(%arg0: i32, %arg1: i32) -> (i32, i32) {
    %c0_i32 = arith.constant 0 : i32
    %c0_i32_0 = arith.constant 0 : i32
    return %arg1, %c0_i32 : i32, i32
  }
  func.func @transform_3(%arg0: i32, %arg1: i32) -> (i32, i32, i32) {
    %c0_i32 = arith.constant 0 : i32
    %c0_i32_0 = arith.constant 0 : i32
    return %arg0, %arg1, %c0_i32 : i32, i32, i32
  }
  func.func @transform_4(%arg0: i32, %arg1: i32) -> (i32, i32, i32) {
    %c0_i32 = arith.constant 0 : i32
    %c0_i32_0 = arith.constant 0 : i32
    return %arg0, %arg1, %c0_i32 : i32, i32, i32
  }
}

module attributes {stable_mosaic.version = 11 : i64} {
  func.func @_bn_relu_kernel(%arg0: i32, %arg1: i32, %arg2: memref<1x32x288xf32, #tpu.memory_space<vmem>>, %arg3: memref<32x1xf32, #tpu.memory_space<vmem>>, %arg4: memref<32x1xf32, #tpu.memory_space<vmem>>, %arg5: memref<1x32x288xf32, #tpu.memory_space<vmem>>) attributes {dimension_semantics = [#tpu.dimension_semantics<parallel>, #tpu.dimension_semantics<parallel>], iteration_bounds = array<i64: 2, 1>, scalar_prefetch = 0 : i64, scratch_operands = 0 : i64, tpu.core_type = #tpu.core_type<tc>, window_params = [{transform_indices = @transform_0, window_bounds = array<i64: 1, 32, 288>}, {transform_indices = @transform_1, window_bounds = array<i64: 32, 1>}, {transform_indices = @transform_2, window_bounds = array<i64: 32, 1>}, {transform_indices = @transform_3, window_bounds = array<i64: 1, 32, 288>}]} {
    %c0 = arith.constant 0 : index
    %c0_0 = arith.constant 0 : index
    %c0_1 = arith.constant 0 : index
    %0 = vector.load %arg2[%c0, %c0_0, %c0_1] : memref<1x32x288xf32, #tpu.memory_space<vmem>>, vector<1x32x288xf32>
    %1 = vector.shape_cast %0 : vector<1x32x288xf32> to vector<32x288xf32>
    %c0_2 = arith.constant 0 : index
    %c0_3 = arith.constant 0 : index
    %2 = vector.load %arg3[%c0_2, %c0_3] : memref<32x1xf32, #tpu.memory_space<vmem>>, vector<32x1xf32>
    %3 = vector.broadcast %2 : vector<32x1xf32> to vector<32x288xf32>
    %4 = arith.mulf %1, %3 : vector<32x288xf32>
    %c0_4 = arith.constant 0 : index
    %c0_5 = arith.constant 0 : index
    %5 = vector.load %arg4[%c0_4, %c0_5] : memref<32x1xf32, #tpu.memory_space<vmem>>, vector<32x1xf32>
    %6 = vector.broadcast %5 : vector<32x1xf32> to vector<32x288xf32>
    %7 = arith.addf %4, %6 : vector<32x288xf32>
    %cst = arith.constant 0.000000e+00 : f32
    %8 = vector.broadcast %cst : f32 to vector<32x288xf32>
    %9 = arith.maximumf %7, %8 : vector<32x288xf32>
    %c0_6 = arith.constant 0 : index
    %c0_7 = arith.constant 0 : index
    %c0_8 = arith.constant 0 : index
    %10 = vector.load %arg5[%c0_6, %c0_7, %c0_8] : memref<1x32x288xf32, #tpu.memory_space<vmem>>, vector<1x32x288xf32>
    %11 = vector.shape_cast %10 : vector<1x32x288xf32> to vector<32x288xf32>
    %12 = vector.shape_cast %9 : vector<32x288xf32> to vector<1x32x288xf32>
    tpu.vector_store %arg5[%c0_6, %c0_7, %c0_8], %12 {strides = array<i32>} : memref<1x32x288xf32, #tpu.memory_space<vmem>>, vector<1x32x288xf32>,
    return
  }
  func.func @transform_0(%arg0: i32, %arg1: i32) -> (i32, i32, i32) {
    %c0_i32 = arith.constant 0 : i32
    %c0_i32_0 = arith.constant 0 : i32
    return %arg0, %arg1, %c0_i32 : i32, i32, i32
  }
  func.func @transform_1(%arg0: i32, %arg1: i32) -> (i32, i32) {
    %c0_i32 = arith.constant 0 : i32
    %c0_i32_0 = arith.constant 0 : i32
    return %arg1, %c0_i32 : i32, i32
  }
  func.func @transform_2(%arg0: i32, %arg1: i32) -> (i32, i32) {
    %c0_i32 = arith.constant 0 : i32
    %c0_i32_0 = arith.constant 0 : i32
    return %arg1, %c0_i32 : i32, i32
  }
  func.func @transform_3(%arg0: i32, %arg1: i32) -> (i32, i32, i32) {
    %c0_i32 = arith.constant 0 : i32
    %c0_i32_0 = arith.constant 0 : i32
    return %arg0, %arg1, %c0_i32 : i32, i32, i32
  }
}

</mosaic_0001>

<llo_original>
// kernel: tile.18
$region0: #{tile.18}
  #allocation0 [shape = 's32[1]{0}', space=sflag, size = 0x4, scoped, tag = 'scoped memory for tile.18']
  %s0 = inlined_call_operand.vmem [shape: f32[8], index: 0, kind: input, shape index: {}]
  %s1 = inlined_call_operand.vmem [shape: f32[4,8], index: 1, kind: output, shape index: {}]
  // Predicated region
  $region2: #{tile.18} parent=0 // pred_check
    _
  $region3: #{tile.18} parent=0 // pred_check_branch
    %3 = sbr.rel (0) target = $region5
  $region4: #{tile.18} parent=0 // pred_region
    _
  $region5: #{tile.18} parent=0 // pred_fallthru
    _
  %v4 = vld [vmem:[%s0] ss:$0 sm:$0xff]
  %5 = vst [vmem:[%s1] sm:$0xf] %v4

// kernel: tile.0
$region0: #{tile.0}
  %s0 = inlined_call_operand.vmem [shape: f32[4,8], index: 0, kind: input, shape index: {}]
  %s1 = inlined_call_operand.vmem [shape: f32[32,1], index: 1, kind: output, shape index: {}]
  $region1: #{tile.0} parent=0
    #allocation0 [shape = 'u8[4096]{0}', space=vmem, size = 0x1000, scoped, tag = 'scoped mem for input reshape']
    %s3 = ssub.s32 16, 1
    %v4 = vld [vmem:[%s0] sm:%s3]
    %5 = vst [vmem:[#allocation0] sm:%s3] %v4
    %v6 = vld [vmem:[#allocation0] sm:$0xf]
    %vm7 = vcmask 7168
    %8 = vst.msk [vmem:[%s1] ss:$8 sm:$0xf] %vm7, %v6
    %v9 = vld [vmem:[#allocation0] sm:$0xf]
    %10 = vrot.lane.b32.xlu0 %v9, 127
    %v11 = vpop.permute.xlu0 %10
    %vm12 = vcmask 7168
    %s13 = scalar_lea.vmem %s1, 1
    %14 = vst.msk [vmem:[%s13] ss:$8 sm:$0xf] %vm12, %v11
    %v15 = vld [vmem:[#allocation0] sm:$0xf]
    %16 = vrot.lane.b32.xlu0 %v15, 126
    %v17 = vpop.permute.xlu0 %16
    %vm18 = vcmask 7168
    %s19 = scalar_lea.vmem %s1, 2
    %20 = vst.msk [vmem:[%s19] ss:$8 sm:$0xf] %vm18, %v17
    %v21 = vld [vmem:[#allocation0] sm:$0xf]
    %22 = vrot.lane.b32.xlu0 %v21, 125
    %v23 = vpop.permute.xlu0 %22
    %vm24 = vcmask 7168
    %s25 = scalar_lea.vmem %s1, 3
    %26 = vst.msk [vmem:[%s25] ss:$8 sm:$0xf] %vm24, %v23
    %v27 = vld [vmem:[#allocation0] sm:$0xf]
    %28 = vrot.lane.b32.xlu0 %v27, 124
    %v29 = vpop.permute.xlu0 %28
    %vm30 = vcmask 7168
    %s31 = scalar_lea.vmem %s1, 4
    %32 = vst.msk [vmem:[%s31] ss:$8 sm:$0xf] %vm30, %v29
    %v33 = vld [vmem:[#allocation0] sm:$0xf]
    %34 = vrot.lane.b32.xlu0 %v33, 123
    %v35 = vpop.permute.xlu0 %34
    %vm36 = vcmask 7168
    %s37 = scalar_lea.vmem %s1, 5
    %38 = vst.msk [vmem:[%s37] ss:$8 sm:$0xf] %vm36, %v35
    %v39 = vld [vmem:[#allocation0] sm:$0xf]
    %40 = vrot.lane.b32.xlu0 %v39, 122
    %v41 = vpop.permute.xlu0 %40
    %vm42 = vcmask 7168
    %s43 = scalar_lea.vmem %s1, 6
    %44 = vst.msk [vmem:[%s43] ss:$8 sm:$0xf] %vm42, %v41
    %v45 = vld [vmem:[#allocation0] sm:$0xf]
    %46 = vrot.lane.b32.xlu0 %v45, 121
    %v47 = vpop.permute.xlu0 %46
    %vm48 = vcmask 7168
    %s49 = scalar_lea.vmem %s1, 7
    %50 = vst.msk [vmem:[%s49] ss:$8 sm:$0xf] %vm48, %v47

// kernel: up_conv_forward.3
$region0: #{up_conv_forward.3}
  #allocation0 [shape = 'u32[]', space=smem, size = 0x4, offset = 0x4, fixed_abs, tag = 'smem constant byte address 0x4 - core index']
  #allocation1 [shape = 'u32[72,128]{1,0:T(1,128)}', space=vmem, size = 0x9000, scoped, tag = 'internal scratch']
  %s0 = inlined_call_operand.vmem [shape: f32[2,32,288], index: 0, kind: input, shape index: {}, may-alias: {0,3}]
  %s1 = inlined_call_operand.vmem [shape: f32[32,1], index: 1, kind: input, shape index: {}]
  %s2 = inlined_call_operand.vmem [shape: f32[32,1], index: 2, kind: input, shape index: {}]
  %s3 = inlined_call_operand.vmem [shape: f32[2,32,288], index: 3, kind: output, shape index: {}, may-alias: {0,3}]
  %s4 = sld [smem:[#allocation0]]
  $region45: #{up_conv_forward.3} parent=0
    _
  %s6 = ssub.s32 1, %s4
  %s7 = scalar_select 0, %s6, %s4
  loop: start=0, step=1, limit=4
  $region2: #{up_conv_forward.3} parent=0 // loop_pre_header
    _
  $region3: #{up_conv_forward.3} parent=0 // loop_header
    %s9 = sphi 0, %s13
    %p10 = scmp.ge.s32.totalorder %s9, 4
    %s16 = sphi 0, %s28
    %s17 = sphi 0, %s24
    %s18 = sphi 0, %s16
    %s19 = sphi 0, %s17
    %s20 = sphi 0, %s18
    %s21 = sphi 0, %s19
    %s33 = sphi 0, %s35
    %s36 = sphi 0, %s33
    %s37 = sphi 0, %s36
    %s53 = sphi 0, %s37
    %s59 = sphi 0, %s61
    %s62 = sphi 0, %s59
    %s63 = sphi 0, %s62
    %s79 = sphi 0, %s63
    %s85 = sphi 0, %s87
    %s88 = sphi 0, %s85
    %s89 = sphi 0, %s88
    %s105 = sphi 0, %s89
    %s113 = sphi 0, %s115
    %s116 = sphi 0, %s113
    %s117 = sphi 0, %s116
    %s133 = sphi 0, %s117
  $region4: #{up_conv_forward.3} parent=0 // loop_header_branch
    %12 = sbr.rel (%p10) target = $region8
  $region5: #{up_conv_forward.3} parent=0 // loop_body
    %s14 = ssub.s32 %s9, 1
    %s15 = ssub.s32 %s9, 2
    %s22 = sadd.s32 1, %s17
    %p23 = scmp.ge.s32.totalorder %s22, 1
    %s24 = scalar_select %p23, 0, %s22
    %s25 = sadd.s32 1, %s16
    %s26 = scalar_select %p23, %s25, %s16
    %p27 = scmp.ge.s32.totalorder %s26, 2
    %s28 = scalar_select %p27, 0, %s26
    %s29 = ssub.s32 %s16, %s28
    %s30 = ssub.s32 %s17, %s24
    %s31 = sor.u32 %s29, %s30
    %p32 = scmp.eq.s32.totalorder %s31, 0
    %s34 = sadd.s32 %s33, 1
    %s35 = scalar_select %p32, %s33, %s34
    %p38 = pneg %p32
    %p39 = scmp.eq.s32.totalorder %s9, 1
    %p40 = por %p38, %p39
    %p41 = scmp.ne.s32.totalorder %s33, %s36
    %p42 = scmp.eq.s32.totalorder %s9, 0
    %p43 = por %p41, %p42
    %p44 = scmp.ne.s32.totalorder %s33, %s36
    %p45 = scmp.eq.s32.totalorder %s14, 1
    %p46 = por %p44, %p45
    %p47 = scmp.ne.s32.totalorder %s36, %s37
    %p48 = scmp.eq.s32.totalorder %s14, 0
    %p49 = por %p47, %p48
    %p50 = scmp.ne.s32.totalorder %s36, %s37
    %p51 = scmp.eq.s32.totalorder %s15, 1
    %p52 = por %p50, %p51
    %p54 = scmp.ne.s32.totalorder %s37, %s53
    %p55 = scmp.eq.s32.totalorder %s15, 0
    %p56 = por %p54, %p55
    %s57 = ssub.s32 %s17, %s24
    %p58 = scmp.eq.s32.totalorder %s57, 0
    %s60 = sadd.s32 %s59, 1
    %s61 = scalar_select %p58, %s59, %s60
    %p64 = pneg %p58
    %p65 = scmp.eq.s32.totalorder %s9, 1
    %p66 = por %p64, %p65
    %p67 = scmp.ne.s32.totalorder %s59, %s62
    %p68 = scmp.eq.s32.totalorder %s9, 0
    %p69 = por %p67, %p68
    %p70 = scmp.ne.s32.totalorder %s59, %s62
    %p71 = scmp.eq.s32.totalorder %s14, 1
    %p72 = por %p70, %p71
    %p73 = scmp.ne.s32.totalorder %s62, %s63
    %p74 = scmp.eq.s32.totalorder %s14, 0
    %p75 = por %p73, %p74
    %p76 = scmp.ne.s32.totalorder %s62, %s63
    %p77 = scmp.eq.s32.totalorder %s15, 1
    %p78 = por %p76, %p77
    %p80 = scmp.ne.s32.totalorder %s63, %s79
    %p81 = scmp.eq.s32.totalorder %s15, 0
    %p82 = por %p80, %p81
    %s83 = ssub.s32 %s17, %s24
    %p84 = scmp.eq.s32.totalorder %s83, 0
    %s86 = sadd.s32 %s85, 1
    %s87 = scalar_select %p84, %s85, %s86
    %p90 = pneg %p84
    %p91 = scmp.eq.s32.totalorder %s9, 1
    %p92 = por %p90, %p91
    %p93 = scmp.ne.s32.totalorder %s85, %s88
    %p94 = scmp.eq.s32.totalorder %s9, 0
    %p95 = por %p93, %p94
    %p96 = scmp.ne.s32.totalorder %s85, %s88
    %p97 = scmp.eq.s32.totalorder %s14, 1
    %p98 = por %p96, %p97
    %p99 = scmp.ne.s32.totalorder %s88, %s89
    %p100 = scmp.eq.s32.totalorder %s14, 0
    %p101 = por %p99, %p100
    %p102 = scmp.ne.s32.totalorder %s88, %s89
    %p103 = scmp.eq.s32.totalorder %s15, 1
    %p104 = por %p102, %p103
    %p106 = scmp.ne.s32.totalorder %s89, %s105
    %p107 = scmp.eq.s32.totalorder %s15, 0
    %p108 = por %p106, %p107
    %s109 = ssub.s32 %s16, %s28
    %s110 = ssub.s32 %s17, %s24
    %s111 = sor.u32 %s109, %s110
    %p112 = scmp.eq.s32.totalorder %s111, 0
    %s114 = sadd.s32 %s113, 1
    %s115 = scalar_select %p112, %s113, %s114
    %p118 = pneg %p112
    %p119 = scmp.eq.s32.totalorder %s9, 1
    %p120 = por %p118, %p119
    %p121 = scmp.ne.s32.totalorder %s113, %s116
    %p122 = scmp.eq.s32.totalorder %s9, 0
    %p123 = por %p121, %p122
    %p124 = scmp.ne.s32.totalorder %s113, %s116
    %p125 = scmp.eq.s32.totalorder %s14, 1
    %p126 = por %p124, %p125
    %p127 = scmp.ne.s32.totalorder %s116, %s117
    %p128 = scmp.eq.s32.totalorder %s14, 0
    %p129 = por %p127, %p128
    %p130 = scmp.ne.s32.totalorder %s116, %s117
    %p131 = scmp.eq.s32.totalorder %s15, 1
    %p132 = por %p130, %p131
    %p134 = scmp.ne.s32.totalorder %s117, %s133
    %p135 = scmp.eq.s32.totalorder %s15, 0
    %p136 = por %p134, %p135
    %p137 = scmp.le.s32.totalorder 1, %s9
    %p138 = scmp.lt.s32.totalorder %s9, 3
    %p139 = pnand %p137, %p138
    %p140 = pneg %p139
    // Predicated region
    $region9: #{up_conv_forward.3} parent=5 // pred_check
      _
    $region10: #{up_conv_forward.3} parent=5 // pred_check_branch
      %142 = sbr.rel (%p139) target = $region12
    $region11: #{up_conv_forward.3} parent=5 // pred_region
      %s143 = ssub.s32 %s9, 1
      // Predicated region
      $region13: #{up_conv_forward.3} parent=11 // pred_check
        %p144 = pneg %p75
      $region14: #{up_conv_forward.3} parent=11 // pred_check_branch
        %146 = sbr.rel (%p144) target = $region16
      $region15: #{up_conv_forward.3} parent=11 // pred_region
        %s147 = smul.u32 4, %s19
        %p148 = scmp.lt.s32.totalorder %s147, 3
        %s149 = scalar_select %p148, %s147, 3
        %s150 = smul.addr %s149, 8
        %s151 = scalar_lea.vmem %s1, %s150
        %s152 = smul.u32 4, %s19
      $region16: #{up_conv_forward.3} parent=11 // pred_fallthru
        _
      // Predicated region
      $region17: #{up_conv_forward.3} parent=11 // pred_check
        %p153 = pneg %p101
      $region18: #{up_conv_forward.3} parent=11 // pred_check_branch
        %155 = sbr.rel (%p153) target = $region20
      $region19: #{up_conv_forward.3} parent=11 // pred_region
        %s156 = smul.u32 4, %s19
        %p157 = scmp.lt.s32.totalorder %s156, 3
        %s158 = scalar_select %p157, %s156, 3
        %s159 = smul.addr %s158, 8
        %s160 = scalar_lea.vmem %s2, %s159
        %s161 = smul.u32 4, %s19
      $region20: #{up_conv_forward.3} parent=11 // pred_fallthru
        _
    $region12: #{up_conv_forward.3} parent=5 // pred_fallthru
      _
    %p162 = scmp.lt.s32.totalorder %s9, 2
    // Predicated region
    $region21: #{up_conv_forward.3} parent=5 // pred_check
      %p163 = pneg %p162
    $region22: #{up_conv_forward.3} parent=5 // pred_check_branch
      %165 = sbr.rel (%p163) target = $region24
    $region23: #{up_conv_forward.3} parent=5 // pred_region
      // Predicated region
      $region25: #{up_conv_forward.3} parent=23 // pred_check
        %p166 = pneg %p43
      $region26: #{up_conv_forward.3} parent=23 // pred_check_branch
        %168 = sbr.rel (%p166) target = $region28
      $region27: #{up_conv_forward.3} parent=23 // pred_region
        %s169 = smul.u32 4, %s17
        %p170 = scmp.lt.s32.totalorder %s16, 1
        %s171 = scalar_select %p170, %s16, 1
        %p172 = scmp.lt.s32.totalorder %s169, 3
        %s173 = scalar_select %p172, %s169, 3
        %s174 = smul.addr %s173, 3
        %s175 = smul.addr %s171, 12
        %s176 = sadd.s32 %s174, %s175
        %s177 = smul.addr %s176, 8
        %s178 = scalar_lea.vmem %s0, %s177
        %s179 = smul.u32 4, %s17
      $region28: #{up_conv_forward.3} parent=23 // pred_fallthru
        _
    $region24: #{up_conv_forward.3} parent=5 // pred_fallthru
      _
    %p180 = scmp.le.s32.totalorder 1, %s9
    %p181 = scmp.lt.s32.totalorder %s9, 3
    %p182 = pnand %p180, %p181
    %p183 = pneg %p182
    // Predicated region
    $region29: #{up_conv_forward.3} parent=5 // pred_check
      _
    $region30: #{up_conv_forward.3} parent=5 // pred_check_branch
      %185 = sbr.rel (%p182) target = $region32
    $region31: #{up_conv_forward.3} parent=5 // pred_region
      %s186 = ssub.s32 %s9, 1
      %s187 = smul.u32 4, %s19
      %p188 = scmp.lt.s32.totalorder %s18, 1
      %s189 = scalar_select %p188, %s18, 1
      %p190 = scmp.lt.s32.totalorder %s187, 3
      %s191 = scalar_select %p190, %s187, 3
      %s192 = smul.addr %s191, 3
      %s193 = smul.addr %s189, 12
      %s194 = sadd.s32 %s192, %s193
      %s195 = smul.addr %s194, 8
      %s196 = scalar_lea.vmem %s0, %s195
      %p197 = pneg %p49
      %p198 = pneg %p46
      %s199 = smul.u32 4, %s19
      %p200 = scmp.lt.s32.totalorder %s199, 3
      %s201 = scalar_select %p200, %s199, 3
      %s202 = smul.addr %s201, 8
      %s203 = scalar_lea.vmem %s1, %s202
      %p204 = pneg %p75
      %p205 = pneg %p72
      %s206 = smul.u32 4, %s19
      %p207 = scmp.lt.s32.totalorder %s206, 3
      %s208 = scalar_select %p207, %s206, 3
      %s209 = smul.addr %s208, 8
      %s210 = scalar_lea.vmem %s2, %s209
      %p211 = pneg %p101
      %p212 = pneg %p98
      %p213 = pneg %p129
      %p214 = pneg %p126
      %s215 = smul.u32 4, %s19
      %p216 = scmp.lt.s32.totalorder %s18, 1
      %s217 = scalar_select %p216, %s18, 1
      %p218 = scmp.lt.s32.totalorder %s215, 3
      %s219 = scalar_select %p218, %s215, 3
      %s220 = smul.addr %s219, 3
      %s221 = smul.addr %s217, 12
      %s222 = sadd.s32 %s220, %s221
      %s223 = smul.addr %s222, 8
      %s224 = scalar_lea.vmem %s3, %s223
      %s225 = smul.u32 4, %s19
      %p226 = scmp.lt.s32.totalorder %s18, 1
      %s227 = scalar_select %p226, %s18, 1
      %p228 = scmp.lt.s32.totalorder %s225, 3
      %s229 = scalar_select %p228, %s225, 3
      %s230 = smul.addr %s229, 3
      %s231 = smul.addr %s227, 12
      %s232 = sadd.s32 %s230, %s231
      %s233 = smul.addr %s232, 8
      %s234 = scalar_lea.vmem %s0, %s233
      %s235 = smul.u32 4, %s19
      %s236 = smul.u32 4, %s19
      %p237 = scmp.lt.s32.totalorder %s236, 3
      %s238 = scalar_select %p237, %s236, 3
      %s239 = smul.addr %s238, 8
      %s240 = scalar_lea.vmem %s1, %s239
      %s241 = smul.u32 4, %s19
      %s242 = smul.u32 4, %s19
      %p243 = scmp.lt.s32.totalorder %s242, 3
      %s244 = scalar_select %p243, %s242, 3
      %s245 = smul.addr %s244, 8
      %s246 = scalar_lea.vmem %s2, %s245
      %s247 = smul.u32 4, %s19
      %s248 = smul.u32 4, %s19
      %p249 = scmp.lt.s32.totalorder %s18, 1
      %s250 = scalar_select %p249, %s18, 1
      %p251 = scmp.lt.s32.totalorder %s248, 3
      %s252 = scalar_select %p251, %s248, 3
      %s253 = smul.addr %s252, 3
      %s254 = smul.addr %s250, 12
      %s255 = sadd.s32 %s253, %s254
      %s256 = smul.addr %s255, 8
      %s257 = scalar_lea.vmem %s3, %s256
      %s258 = smul.u32 4, %s19
      %v259 = vld [vmem:[%s234] sm:$0xff]
      %v260 = vld [vmem:[%s234 + $0x8] sm:$0xff]
      %v261 = vld [vmem:[%s234 + $0x10] sm:$0xff]
      %v262 = vld [vmem:[%s234 + $0x18] sm:$0xff]
      %v263 = vld [vmem:[%s234 + $0x20] sm:$0xff]
      %v264 = vld [vmem:[%s234 + $0x28] sm:$0xff]
      %v265 = vld [vmem:[%s234 + $0x30] sm:$0xff]
      %v266 = vld [vmem:[%s234 + $0x38] sm:$0xff]
      %v267 = vld [vmem:[%s234 + $0x40] sm:$0xff]
      %v268 = vld [vmem:[%s234 + $0x48] sm:$0xff]
      %v269 = vld [vmem:[%s234 + $0x50] sm:$0xff]
      %v270 = vld [vmem:[%s234 + $0x58] sm:$0xff]
      %v271 = vld [vmem:[%s240] sm:$0xff]
      %v272 = vld [vmem:[%s240 + $0x8] sm:$0xff]
      %v273 = vld [vmem:[%s240 + $0x10] sm:$0xff]
      %v274 = vld [vmem:[%s240 + $0x18] sm:$0xff]
      %276 = vset.pattern.permute.xlu0 0
      %277 = vperm.xlu0 %276, %v271
      %v278 = vpop.permute.xlu0 %277
      %281 = vset.pattern.permute.xlu0 0
      %282 = vperm.xlu0 %281, %v272
      %v283 = vpop.permute.xlu0 %282
      %286 = vset.pattern.permute.xlu0 0
      %287 = vperm.xlu0 %286, %v273
      %v288 = vpop.permute.xlu0 %287
      %291 = vset.pattern.permute.xlu0 0
      %292 = vperm.xlu0 %291, %v274
      %v293 = vpop.permute.xlu0 %292
      %v295 = vmul.f32 %v259, %v278
      %v296 = vmul.f32 %v260, %v278
      %v297 = vmul.f32 %v261, %v278
      %v298 = vmul.f32 %v262, %v283
      %v299 = vmul.f32 %v263, %v283
      %v300 = vmul.f32 %v264, %v283
      %v301 = vmul.f32 %v265, %v288
      %v302 = vmul.f32 %v266, %v288
      %v303 = vmul.f32 %v267, %v288
      %v304 = vmul.f32 %v268, %v293
      %v305 = vmul.f32 %v269, %v293
      %v306 = vmul.f32 %v270, %v293
      %v307 = vld [vmem:[%s246] sm:$0xff]
      %v308 = vld [vmem:[%s246 + $0x8] sm:$0xff]
      %v309 = vld [vmem:[%s246 + $0x10] sm:$0xff]
      %v310 = vld [vmem:[%s246 + $0x18] sm:$0xff]
      %312 = vset.pattern.permute.xlu0 0
      %313 = vperm.xlu0 %312, %v307
      %v314 = vpop.permute.xlu0 %313
      %317 = vset.pattern.permute.xlu0 0
      %318 = vperm.xlu0 %317, %v308
      %v319 = vpop.permute.xlu0 %318
      %322 = vset.pattern.permute.xlu0 0
      %323 = vperm.xlu0 %322, %v309
      %v324 = vpop.permute.xlu0 %323
      %327 = vset.pattern.permute.xlu0 0
      %328 = vperm.xlu0 %327, %v310
      %v329 = vpop.permute.xlu0 %328
      %v331 = vadd.f32 %v295, %v314
      %v332 = vadd.f32 %v296, %v314
      %v333 = vadd.f32 %v297, %v314
      %v334 = vadd.f32 %v298, %v319
      %v335 = vadd.f32 %v299, %v319
      %v336 = vadd.f32 %v300, %v319
      %v337 = vadd.f32 %v301, %v324
      %v338 = vadd.f32 %v302, %v324
      %v339 = vadd.f32 %v303, %v324
      %v340 = vadd.f32 %v304, %v329
      %v341 = vadd.f32 %v305, %v329
      %v342 = vadd.f32 %v306, %v329
      %v343 = vmax.f32 %v331, 0.0
      %v344 = vmax.f32 %v332, 0.0
      %v345 = vmax.f32 %v333, 0.0
      %v346 = vmax.f32 %v334, 0.0
      %v347 = vmax.f32 %v335, 0.0
      %v348 = vmax.f32 %v336, 0.0
      %v349 = vmax.f32 %v337, 0.0
      %v350 = vmax.f32 %v338, 0.0
      %v351 = vmax.f32 %v339, 0.0
      %v352 = vmax.f32 %v340, 0.0
      %v353 = vmax.f32 %v341, 0.0
      %v354 = vmax.f32 %v342, 0.0
      %355 = vst [vmem:[%s257] sm:$0xff] %v343
      %356 = vst [vmem:[%s257 + $0x8] sm:$0xff] %v344
      %vm357 = vcmask 261120
      %358 = vst.msk [vmem:[%s257 + $0x10] sm:$0xff] %vm357, %v345
      %359 = vst [vmem:[%s257 + $0x18] sm:$0xff] %v346
      %360 = vst [vmem:[%s257 + $0x20] sm:$0xff] %v347
      %361 = vst.msk [vmem:[%s257 + $0x28] sm:$0xff] %vm357, %v348
      %362 = vst [vmem:[%s257 + $0x30] sm:$0xff] %v349
      %363 = vst [vmem:[%s257 + $0x38] sm:$0xff] %v350
      %364 = vst.msk [vmem:[%s257 + $0x40] sm:$0xff] %vm357, %v351
      %365 = vst [vmem:[%s257 + $0x48] sm:$0xff] %v352
      %366 = vst [vmem:[%s257 + $0x50] sm:$0xff] %v353
      %367 = vst.msk [vmem:[%s257 + $0x58] sm:$0xff] %vm357, %v354
      %s368 = smul.u32 4, %s19
      %p369 = scmp.lt.s32.totalorder %s18, 1
      %s370 = scalar_select %p369, %s18, 1
      %p371 = scmp.lt.s32.totalorder %s368, 3
      %s372 = scalar_select %p371, %s368, 3
      %s373 = smul.addr %s372, 3
      %s374 = smul.addr %s370, 12
      %s375 = sadd.s32 %s373, %s374
      %s376 = smul.addr %s375, 8
      %s377 = scalar_lea.vmem %s3, %s376
      // Predicated region
      $region33: #{up_conv_forward.3} parent=31 // pred_check
        %p378 = pneg %p126
      $region34: #{up_conv_forward.3} parent=31 // pred_check_branch
        %380 = sbr.rel (%p378) target = $region36
      $region35: #{up_conv_forward.3} parent=31 // pred_region
        %s381 = smul.u32 4, %s19
      $region36: #{up_conv_forward.3} parent=31 // pred_fallthru
        _
    $region32: #{up_conv_forward.3} parent=5 // pred_fallthru
      _
    %p382 = scmp.le.s32.totalorder 2, %s9
    // Predicated region
    $region37: #{up_conv_forward.3} parent=5 // pred_check
      %p383 = pneg %p382
    $region38: #{up_conv_forward.3} parent=5 // pred_check_branch
      %385 = sbr.rel (%p383) target = $region40
    $region39: #{up_conv_forward.3} parent=5 // pred_region
      %s386 = ssub.s32 %s9, 2
      // Predicated region
      $region41: #{up_conv_forward.3} parent=39 // pred_check
        %p387 = pneg %p132
      $region42: #{up_conv_forward.3} parent=39 // pred_check_branch
        %389 = sbr.rel (%p387) target = $region44
      $region43: #{up_conv_forward.3} parent=39 // pred_region
        %s390 = smul.u32 4, %s21
        %p391 = scmp.lt.s32.totalorder %s20, 1
        %s392 = scalar_select %p391, %s20, 1
        %p393 = scmp.lt.s32.totalorder %s390, 3
        %s394 = scalar_select %p393, %s390, 3
        %s395 = smul.addr %s394, 3
        %s396 = smul.addr %s392, 12
        %s397 = sadd.s32 %s395, %s396
        %s398 = smul.addr %s397, 8
        %s399 = scalar_lea.vmem %s3, %s398
      $region44: #{up_conv_forward.3} parent=39 // pred_fallthru
        _
    $region40: #{up_conv_forward.3} parent=5 // pred_fallthru
      _
  $region6: #{up_conv_forward.3} parent=0 // loop_footer
    %s13 = sadd.s32 1, %s9
  $region7: #{up_conv_forward.3} parent=0 // loop_footer_branch
    %8 = sbr.rel target = $region3
  $region8: #{up_conv_forward.3} parent=0 // loop_exit
    _

// kernel: up_conv_forward.2
$region0: #{up_conv_forward.2}
  #allocation0 [shape = 'u32[]', space=smem, size = 0x4, offset = 0x4, fixed_abs, tag = 'smem constant byte address 0x4 - core index']
  #allocation1 [shape = 'u32[72,128]{1,0:T(1,128)}', space=vmem, size = 0x9000, scoped, tag = 'internal scratch']
  #allocation2 [shape = 'f32[72,288]{1,0:T(8,128)}', space=vmem, size = 0x1b000, scoped, tag = 'scratch operand']
  %s0 = inlined_call_operand.vmem [shape: f32[2,8,342], index: 0, kind: input, shape index: {}]
  %s1 = inlined_call_operand.vmem [shape: f32[32,72], index: 1, kind: input, shape index: {}]
  %s2 = inlined_call_operand.vmem [shape: f32[32,1], index: 2, kind: input, shape index: {}]
  %s3 = inlined_call_operand.vmem [shape: f32[2,32,288], index: 3, kind: output, shape index: {0}]
  %s4 = inlined_call_operand.vmem [shape: f32[2,32,2], index: 4, kind: output, shape index: {1}]
  %5 = xla_tuple %s3, %s4
  %s6 = sld [smem:[#allocation0]]
  $region57: #{up_conv_forward.2} parent=0
    _
  %s8 = ssub.s32 1, %s6
  %s9 = scalar_select 0, %s8, %s6
  loop: start=0, step=1, limit=4
  $region2: #{up_conv_forward.2} parent=0 // loop_pre_header
    _
  $region3: #{up_conv_forward.2} parent=0 // loop_header
    %s11 = sphi 0, %s15
    %p12 = scmp.ge.s32.totalorder %s11, 4
    %s18 = sphi 0, %s30
    %s19 = sphi 0, %s26
    %s20 = sphi 0, %s18
    %s21 = sphi 0, %s19
    %s22 = sphi 0, %s20
    %s23 = sphi 0, %s21
    %s33 = sphi 0, %s35
    %s36 = sphi 0, %s33
    %s37 = sphi 0, %s36
    %s53 = sphi 0, %s37
    %s59 = sphi 0, %s61
    %s62 = sphi 0, %s59
    %s63 = sphi 0, %s62
    %s79 = sphi 0, %s63
    %s85 = sphi 0, %s87
    %s88 = sphi 0, %s85
    %s89 = sphi 0, %s88
    %s105 = sphi 0, %s89
    %s113 = sphi 0, %s115
    %s116 = sphi 0, %s113
    %s117 = sphi 0, %s116
    %s133 = sphi 0, %s117
    %s141 = sphi 0, %s143
    %s144 = sphi 0, %s141
    %s145 = sphi 0, %s144
    %s161 = sphi 0, %s145
  $region4: #{up_conv_forward.2} parent=0 // loop_header_branch
    %14 = sbr.rel (%p12) target = $region8
  $region5: #{up_conv_forward.2} parent=0 // loop_body
    %s16 = ssub.s32 %s11, 1
    %s17 = ssub.s32 %s11, 2
    %s24 = sadd.s32 1, %s19
    %p25 = scmp.ge.s32.totalorder %s24, 1
    %s26 = scalar_select %p25, 0, %s24
    %s27 = sadd.s32 1, %s18
    %s28 = scalar_select %p25, %s27, %s18
    %p29 = scmp.ge.s32.totalorder %s28, 2
    %s30 = scalar_select %p29, 0, %s28
    %s31 = ssub.s32 %s18, %s30
    %p32 = scmp.eq.s32.totalorder %s31, 0
    %s34 = sadd.s32 %s33, 1
    %s35 = scalar_select %p32, %s33, %s34
    %p38 = pneg %p32
    %p39 = scmp.eq.s32.totalorder %s11, 1
    %p40 = por %p38, %p39
    %p41 = scmp.ne.s32.totalorder %s33, %s36
    %p42 = scmp.eq.s32.totalorder %s11, 0
    %p43 = por %p41, %p42
    %p44 = scmp.ne.s32.totalorder %s33, %s36
    %p45 = scmp.eq.s32.totalorder %s16, 1
    %p46 = por %p44, %p45
    %p47 = scmp.ne.s32.totalorder %s36, %s37
    %p48 = scmp.eq.s32.totalorder %s16, 0
    %p49 = por %p47, %p48
    %p50 = scmp.ne.s32.totalorder %s36, %s37
    %p51 = scmp.eq.s32.totalorder %s17, 1
    %p52 = por %p50, %p51
    %p54 = scmp.ne.s32.totalorder %s37, %s53
    %p55 = scmp.eq.s32.totalorder %s17, 0
    %p56 = por %p54, %p55
    %s57 = ssub.s32 %s19, %s26
    %p58 = scmp.eq.s32.totalorder %s57, 0
    %s60 = sadd.s32 %s59, 1
    %s61 = scalar_select %p58, %s59, %s60
    %p64 = pneg %p58
    %p65 = scmp.eq.s32.totalorder %s11, 1
    %p66 = por %p64, %p65
    %p67 = scmp.ne.s32.totalorder %s59, %s62
    %p68 = scmp.eq.s32.totalorder %s11, 0
    %p69 = por %p67, %p68
    %p70 = scmp.ne.s32.totalorder %s59, %s62
    %p71 = scmp.eq.s32.totalorder %s16, 1
    %p72 = por %p70, %p71
    %p73 = scmp.ne.s32.totalorder %s62, %s63
    %p74 = scmp.eq.s32.totalorder %s16, 0
    %p75 = por %p73, %p74
    %p76 = scmp.ne.s32.totalorder %s62, %s63
    %p77 = scmp.eq.s32.totalorder %s17, 1
    %p78 = por %p76, %p77
    %p80 = scmp.ne.s32.totalorder %s63, %s79
    %p81 = scmp.eq.s32.totalorder %s17, 0
    %p82 = por %p80, %p81
    %s83 = ssub.s32 %s19, %s26
    %p84 = scmp.eq.s32.totalorder %s83, 0
    %s86 = sadd.s32 %s85, 1
    %s87 = scalar_select %p84, %s85, %s86
    %p90 = pneg %p84
    %p91 = scmp.eq.s32.totalorder %s11, 1
    %p92 = por %p90, %p91
    %p93 = scmp.ne.s32.totalorder %s85, %s88
    %p94 = scmp.eq.s32.totalorder %s11, 0
    %p95 = por %p93, %p94
    %p96 = scmp.ne.s32.totalorder %s85, %s88
    %p97 = scmp.eq.s32.totalorder %s16, 1
    %p98 = por %p96, %p97
    %p99 = scmp.ne.s32.totalorder %s88, %s89
    %p100 = scmp.eq.s32.totalorder %s16, 0
    %p101 = por %p99, %p100
    %p102 = scmp.ne.s32.totalorder %s88, %s89
    %p103 = scmp.eq.s32.totalorder %s17, 1
    %p104 = por %p102, %p103
    %p106 = scmp.ne.s32.totalorder %s89, %s105
    %p107 = scmp.eq.s32.totalorder %s17, 0
    %p108 = por %p106, %p107
    %s109 = ssub.s32 %s18, %s30
    %s110 = ssub.s32 %s19, %s26
    %s111 = sor.u32 %s109, %s110
    %p112 = scmp.eq.s32.totalorder %s111, 0
    %s114 = sadd.s32 %s113, 1
    %s115 = scalar_select %p112, %s113, %s114
    %p118 = pneg %p112
    %p119 = scmp.eq.s32.totalorder %s11, 1
    %p120 = por %p118, %p119
    %p121 = scmp.ne.s32.totalorder %s113, %s116
    %p122 = scmp.eq.s32.totalorder %s11, 0
    %p123 = por %p121, %p122
    %p124 = scmp.ne.s32.totalorder %s113, %s116
    %p125 = scmp.eq.s32.totalorder %s16, 1
    %p126 = por %p124, %p125
    %p127 = scmp.ne.s32.totalorder %s116, %s117
    %p128 = scmp.eq.s32.totalorder %s16, 0
    %p129 = por %p127, %p128
    %p130 = scmp.ne.s32.totalorder %s116, %s117
    %p131 = scmp.eq.s32.totalorder %s17, 1
    %p132 = por %p130, %p131
    %p134 = scmp.ne.s32.totalorder %s117, %s133
    %p135 = scmp.eq.s32.totalorder %s17, 0
    %p136 = por %p134, %p135
    %s137 = ssub.s32 %s18, %s30
    %s138 = ssub.s32 %s19, %s26
    %s139 = sor.u32 %s137, %s138
    %p140 = scmp.eq.s32.totalorder %s139, 0
    %s142 = sadd.s32 %s141, 1
    %s143 = scalar_select %p140, %s141, %s142
    %p146 = pneg %p140
    %p147 = scmp.eq.s32.totalorder %s11, 1
    %p148 = por %p146, %p147
    %p149 = scmp.ne.s32.totalorder %s141, %s144
    %p150 = scmp.eq.s32.totalorder %s11, 0
    %p151 = por %p149, %p150
    %p152 = scmp.ne.s32.totalorder %s141, %s144
    %p153 = scmp.eq.s32.totalorder %s16, 1
    %p154 = por %p152, %p153
    %p155 = scmp.ne.s32.totalorder %s144, %s145
    %p156 = scmp.eq.s32.totalorder %s16, 0
    %p157 = por %p155, %p156
    %p158 = scmp.ne.s32.totalorder %s144, %s145
    %p159 = scmp.eq.s32.totalorder %s17, 1
    %p160 = por %p158, %p159
    %p162 = scmp.ne.s32.totalorder %s145, %s161
    %p163 = scmp.eq.s32.totalorder %s17, 0
    %p164 = por %p162, %p163
    %p165 = scmp.le.s32.totalorder 1, %s11
    %p166 = scmp.lt.s32.totalorder %s11, 3
    %p167 = pnand %p165, %p166
    %p168 = pneg %p167
    // Predicated region
    $region9: #{up_conv_forward.2} parent=5 // pred_check
      _
    $region10: #{up_conv_forward.2} parent=5 // pred_check_branch
      %170 = sbr.rel (%p167) target = $region12
    $region11: #{up_conv_forward.2} parent=5 // pred_region
      %s171 = ssub.s32 %s11, 1
      // Predicated region
      $region13: #{up_conv_forward.2} parent=11 // pred_check
        %p172 = pneg %p75
      $region14: #{up_conv_forward.2} parent=11 // pred_check_branch
        %174 = sbr.rel (%p172) target = $region16
      $region15: #{up_conv_forward.2} parent=11 // pred_region
        %s175 = smul.u32 4, %s21
        %p176 = scmp.lt.s32.totalorder %s175, 3
        %s177 = scalar_select %p176, %s175, 3
        %s178 = smul.addr %s177, 8
        %s179 = scalar_lea.vmem %s1, %s178
        %s180 = smul.u32 4, %s21
      $region16: #{up_conv_forward.2} parent=11 // pred_fallthru
        _
      // Predicated region
      $region17: #{up_conv_forward.2} parent=11 // pred_check
        %p181 = pneg %p101
      $region18: #{up_conv_forward.2} parent=11 // pred_check_branch
        %183 = sbr.rel (%p181) target = $region20
      $region19: #{up_conv_forward.2} parent=11 // pred_region
        %s184 = smul.u32 4, %s21
        %p185 = scmp.lt.s32.totalorder %s184, 3
        %s186 = scalar_select %p185, %s184, 3
        %s187 = smul.addr %s186, 8
        %s188 = scalar_lea.vmem %s2, %s187
        %s189 = smul.u32 4, %s21
      $region20: #{up_conv_forward.2} parent=11 // pred_fallthru
        _
    $region12: #{up_conv_forward.2} parent=5 // pred_fallthru
      _
    %p190 = scmp.lt.s32.totalorder %s11, 2
    // Predicated region
    $region21: #{up_conv_forward.2} parent=5 // pred_check
      %p191 = pneg %p190
    $region22: #{up_conv_forward.2} parent=5 // pred_check_branch
      %193 = sbr.rel (%p191) target = $region24
    $region23: #{up_conv_forward.2} parent=5 // pred_region
      // Predicated region
      $region25: #{up_conv_forward.2} parent=23 // pred_check
        %p194 = pneg %p43
      $region26: #{up_conv_forward.2} parent=23 // pred_check_branch
        %196 = sbr.rel (%p194) target = $region28
      $region27: #{up_conv_forward.2} parent=23 // pred_region
        %p197 = scmp.lt.s32.totalorder %s18, 1
        %s198 = scalar_select %p197, %s18, 1
        %s199 = smul.addr %s198, 3
        %s200 = smul.addr %s199, 8
        %s201 = scalar_lea.vmem %s0, %s200
      $region28: #{up_conv_forward.2} parent=23 // pred_fallthru
        _
    $region24: #{up_conv_forward.2} parent=5 // pred_fallthru
      _
    %p202 = scmp.le.s32.totalorder 1, %s11
    %p203 = scmp.lt.s32.totalorder %s11, 3
    %p204 = pnand %p202, %p203
    %p205 = pneg %p204
    // Predicated region
    $region29: #{up_conv_forward.2} parent=5 // pred_check
      _
    $region30: #{up_conv_forward.2} parent=5 // pred_check_branch
      %207 = sbr.rel (%p204) target = $region32
    $region31: #{up_conv_forward.2} parent=5 // pred_region
      %s208 = ssub.s32 %s11, 1
      %p209 = scmp.lt.s32.totalorder %s20, 1
      %s210 = scalar_select %p209, %s20, 1
      %s211 = smul.addr %s210, 3
      %s212 = smul.addr %s211, 8
      %s213 = scalar_lea.vmem %s0, %s212
      %p214 = pneg %p49
      %p215 = pneg %p46
      %s216 = smul.u32 4, %s21
      %p217 = scmp.lt.s32.totalorder %s216, 3
      %s218 = scalar_select %p217, %s216, 3
      %s219 = smul.addr %s218, 8
      %s220 = scalar_lea.vmem %s1, %s219
      %p221 = pneg %p75
      %p222 = pneg %p72
      %s223 = smul.u32 4, %s21
      %p224 = scmp.lt.s32.totalorder %s223, 3
      %s225 = scalar_select %p224, %s223, 3
      %s226 = smul.addr %s225, 8
      %s227 = scalar_lea.vmem %s2, %s226
      %p228 = pneg %p101
      %p229 = pneg %p98
      %p230 = pneg %p129
      %p231 = pneg %p126
      %s232 = smul.u32 4, %s21
      %p233 = scmp.lt.s32.totalorder %s20, 1
      %s234 = scalar_select %p233, %s20, 1
      %p235 = scmp.lt.s32.totalorder %s232, 3
      %s236 = scalar_select %p235, %s232, 3
      %s237 = smul.addr %s236, 3
      %s238 = smul.addr %s234, 12
      %s239 = sadd.s32 %s237, %s238
      %s240 = smul.addr %s239, 8
      %s241 = scalar_lea.vmem %s3, %s240
      %p242 = pneg %p157
      %p243 = pneg %p154
      %s244 = smul.u32 4, %s21
      %p245 = scmp.lt.s32.totalorder %s20, 1
      %s246 = scalar_select %p245, %s20, 1
      %p247 = scmp.lt.s32.totalorder %s244, 3
      %s248 = scalar_select %p247, %s244, 3
      %s249 = smul.addr %s246, 4
      %s250 = sadd.s32 %s248, %s249
      %s251 = smul.addr %s250, 8
      %s252 = scalar_lea.vmem %s4, %s251
      %p253 = scmp.lt.s32.totalorder %s20, 1
      %s254 = scalar_select %p253, %s20, 1
      %s255 = smul.addr %s254, 3
      %s256 = smul.addr %s255, 8
      %s257 = scalar_lea.vmem %s0, %s256
      %s258 = smul.u32 4, %s21
      %p259 = scmp.lt.s32.totalorder %s258, 3
      %s260 = scalar_select %p259, %s258, 3
      %s261 = smul.addr %s260, 8
      %s262 = scalar_lea.vmem %s1, %s261
      %s263 = smul.u32 4, %s21
      %s264 = smul.u32 4, %s21
      %p265 = scmp.lt.s32.totalorder %s264, 3
      %s266 = scalar_select %p265, %s264, 3
      %s267 = smul.addr %s266, 8
      %s268 = scalar_lea.vmem %s2, %s267
      %s269 = smul.u32 4, %s21
      %s270 = smul.u32 4, %s21
      %p271 = scmp.lt.s32.totalorder %s20, 1
      %s272 = scalar_select %p271, %s20, 1
      %p273 = scmp.lt.s32.totalorder %s270, 3
      %s274 = scalar_select %p273, %s270, 3
      %s275 = smul.addr %s274, 3
      %s276 = smul.addr %s272, 12
      %s277 = sadd.s32 %s275, %s276
      %s278 = smul.addr %s277, 8
      %s279 = scalar_lea.vmem %s3, %s278
      %s280 = smul.u32 4, %s21
      %s281 = smul.u32 4, %s21
      %p282 = scmp.lt.s32.totalorder %s20, 1
      %s283 = scalar_select %p282, %s20, 1
      %p284 = scmp.lt.s32.totalorder %s281, 3
      %s285 = scalar_select %p284, %s281, 3
      %s286 = smul.addr %s283, 4
      %s287 = sadd.s32 %s285, %s286
      %s288 = smul.addr %s287, 8
      %s289 = scalar_lea.vmem %s4, %s288
      %s290 = smul.u32 4, %s21
      %p291 = scmp.eq.s32.totalorder %s21, 0
      // Predicated region
      $region33: #{up_conv_forward.2} parent=31 // pred_check
        %p292 = pneg %p291
      $region34: #{up_conv_forward.2} parent=31 // pred_check_branch
        %294 = sbr.rel (%p292) target = $region36
      $region35: #{up_conv_forward.2} parent=31 // pred_region
        %v295 = vld [vmem:[%s257] sm:$0xff]
        %v296 = vld [vmem:[%s257 + $0x8] sm:$0xff]
        %v297 = vld [vmem:[%s257 + $0x10] sm:$0xff]
        %298 = vst [vmem:[#allocation2] sm:$0xff] %v295
        %299 = vst [vmem:[#allocation2 + $0x8] sm:$0xff] %v296
        %vm300 = vcmask 261120
        %301 = vst.msk [vmem:[#allocation2 + $0x10] sm:$0xff] %vm300, %v297
        %305 = vrot.lane.b32.xlu0 %v295, 127
        %v306 = vpop.permute.xlu0 %305
        %307 = vrot.lane.b32.xlu0 %v296, 127
        %v308 = vpop.permute.xlu0 %307
        %309 = vrot.lane.b32.xlu0 %v297, 127
        %v310 = vpop.permute.xlu0 %309
        %vm311 = vcmask 1039360
        %v312 = vsel %vm311, %v306, %v308
        %v313 = vsel %vm311, %v308, %v310
        %317 = vst [vmem:[#allocation2 + $0x18] sm:$0xff] %v312
        %318 = vst [vmem:[#allocation2 + $0x20] sm:$0xff] %v313
        %319 = vst.msk [vmem:[#allocation2 + $0x28] sm:$0xff] %vm300, %v310
        %320 = vrot.lane.b32.xlu0 %v295, 126
        %v321 = vpop.permute.xlu0 %320
        %322 = vrot.lane.b32.xlu0 %v296, 126
        %v323 = vpop.permute.xlu0 %322
        %324 = vrot.lane.b32.xlu0 %v297, 126
        %v325 = vpop.permute.xlu0 %324
        %vm326 = vcmask 1031168
        %v327 = vsel %vm326, %v321, %v323
        %v328 = vsel %vm326, %v323, %v325
        %332 = vst [vmem:[#allocation2 + $0x30] sm:$0xff] %v327
        %333 = vst [vmem:[#allocation2 + $0x38] sm:$0xff] %v328
        %334 = vst.msk [vmem:[#allocation2 + $0x40] sm:$0xff] %vm300, %v325
        %335 = vrot.lane.b32.xlu0 %v295, 110
        %v336 = vpop.permute.xlu0 %335
        %337 = vrot.lane.b32.xlu0 %v296, 110
        %v338 = vpop.permute.xlu0 %337
        %339 = vrot.lane.b32.xlu0 %v297, 110
        %v340 = vpop.permute.xlu0 %339
        %vm341 = vcmask 900096
        %v342 = vsel %vm341, %v336, %v338
        %v343 = vsel %vm341, %v338, %v340
        %347 = vst [vmem:[#allocation2 + $0x48] sm:$0xff] %v342
        %348 = vst [vmem:[#allocation2 + $0x50] sm:$0xff] %v343
        %349 = vst.msk [vmem:[#allocation2 + $0x58] sm:$0xff] %vm300, %v340
        %350 = vrot.lane.b32.xlu0 %v295, 109
        %v351 = vpop.permute.xlu0 %350
        %352 = vrot.lane.b32.xlu0 %v296, 109
        %v353 = vpop.permute.xlu0 %352
        %354 = vrot.lane.b32.xlu0 %v297, 109
        %v355 = vpop.permute.xlu0 %354
        %vm356 = vcmask 891904
        %v357 = vsel %vm356, %v351, %v353
        %v358 = vsel %vm356, %v353, %v355
        %362 = vst [vmem:[#allocation2 + $0x60] sm:$0xff] %v357
        %363 = vst [vmem:[#allocation2 + $0x68] sm:$0xff] %v358
        %364 = vst.msk [vmem:[#allocation2 + $0x70] sm:$0xff] %vm300, %v355
        %365 = vrot.lane.b32.xlu0 %v295, 108
        %v366 = vpop.permute.xlu0 %365
        %367 = vrot.lane.b32.xlu0 %v296, 108
        %v368 = vpop.permute.xlu0 %367
        %369 = vrot.lane.b32.xlu0 %v297, 108
        %v370 = vpop.permute.xlu0 %369
        %vm371 = vcmask 883712
        %v372 = vsel %vm371, %v366, %v368
        %v373 = vsel %vm371, %v368, %v370
        %377 = vst [vmem:[#allocation2 + $0x78] sm:$0xff] %v372
        %378 = vst [vmem:[#allocation2 + $0x80] sm:$0xff] %v373
        %379 = vst.msk [vmem:[#allocation2 + $0x88] sm:$0xff] %vm300, %v370
        %380 = vrot.lane.b32.xlu0 %v295, 92
        %v381 = vpop.permute.xlu0 %380
        %382 = vrot.lane.b32.xlu0 %v296, 92
        %v383 = vpop.permute.xlu0 %382
        %384 = vrot.lane.b32.xlu0 %v297, 92
        %v385 = vpop.permute.xlu0 %384
        %vm386 = vcmask 752640
        %v387 = vsel %vm386, %v381, %v383
        %v388 = vsel %vm386, %v383, %v385
        %392 = vst [vmem:[#allocation2 + $0x90] sm:$0xff] %v387
        %393 = vst [vmem:[#allocation2 + $0x98] sm:$0xff] %v388
        %394 = vst.msk [vmem:[#allocation2 + $0xa0] sm:$0xff] %vm300, %v385
        %395 = vrot.lane.b32.xlu0 %v295, 91
        %v396 = vpop.permute.xlu0 %395
        %397 = vrot.lane.b32.xlu0 %v296, 91
        %v398 = vpop.permute.xlu0 %397
        %399 = vrot.lane.b32.xlu0 %v297, 91
        %v400 = vpop.permute.xlu0 %399
        %vm401 = vcmask 744448
        %v402 = vsel %vm401, %v396, %v398
        %v403 = vsel %vm401, %v398, %v400
        %407 = vst [vmem:[#allocation2 + $0xa8] sm:$0xff] %v402
        %408 = vst [vmem:[#allocation2 + $0xb0] sm:$0xff] %v403
        %409 = vst.msk [vmem:[#allocation2 + $0xb8] sm:$0xff] %vm300, %v400
        %410 = vrot.lane.b32.xlu0 %v295, 90
        %v411 = vpop.permute.xlu0 %410
        %412 = vrot.lane.b32.xlu0 %v296, 90
        %v413 = vpop.permute.xlu0 %412
        %414 = vrot.lane.b32.xlu0 %v297, 90
        %v415 = vpop.permute.xlu0 %414
        %vm416 = vcmask 736256
        %v417 = vsel %vm416, %v411, %v413
        %v418 = vsel %vm416, %v413, %v415
        %422 = vst [vmem:[#allocation2 + $0xc0] sm:$0xff] %v417
        %423 = vst [vmem:[#allocation2 + $0xc8] sm:$0xff] %v418
        %424 = vst.msk [vmem:[#allocation2 + $0xd0] sm:$0xff] %vm300, %v415
      $region36: #{up_conv_forward.2} parent=31 // pred_fallthru
        _
      %v425 = vld [vmem:[%s262] sm:$0xff]
      %v426 = vld [vmem:[%s262 + $0x8] sm:$0xff]
      %v427 = vld [vmem:[%s262 + $0x10] sm:$0xff]
      %v428 = vld [vmem:[%s262 + $0x18] sm:$0xff]
      %v429 = vld [vmem:[#allocation2] sm:$0xff]
      %v430 = vld [vmem:[#allocation2 + $0x8] sm:$0xff]
      %v431 = vld [vmem:[#allocation2 + $0x10] sm:$0xff]
      %v432 = vld [vmem:[#allocation2 + $0x18] sm:$0xff]
      %v433 = vld [vmem:[#allocation2 + $0x20] sm:$0xff]
      %v434 = vld [vmem:[#allocation2 + $0x28] sm:$0xff]
      %v435 = vld [vmem:[#allocation2 + $0x30] sm:$0xff]
      %v436 = vld [vmem:[#allocation2 + $0x38] sm:$0xff]
      %v437 = vld [vmem:[#allocation2 + $0x40] sm:$0xff]
      %v438 = vld [vmem:[#allocation2 + $0x48] sm:$0xff]
      %v439 = vld [vmem:[#allocation2 + $0x50] sm:$0xff]
      %v440 = vld [vmem:[#allocation2 + $0x58] sm:$0xff]
      %v441 = vld [vmem:[#allocation2 + $0x60] sm:$0xff]
      %v442 = vld [vmem:[#allocation2 + $0x68] sm:$0xff]
      %v443 = vld [vmem:[#allocation2 + $0x70] sm:$0xff]
      %v444 = vld [vmem:[#allocation2 + $0x78] sm:$0xff]
      %v445 = vld [vmem:[#allocation2 + $0x80] sm:$0xff]
      %v446 = vld [vmem:[#allocation2 + $0x88] sm:$0xff]
      %v447 = vld [vmem:[#allocation2 + $0x90] sm:$0xff]
      %v448 = vld [vmem:[#allocation2 + $0x98] sm:$0xff]
      %v449 = vld [vmem:[#allocation2 + $0xa0] sm:$0xff]
      %v450 = vld [vmem:[#allocation2 + $0xa8] sm:$0xff]
      %v451 = vld [vmem:[#allocation2 + $0xb0] sm:$0xff]
      %v452 = vld [vmem:[#allocation2 + $0xb8] sm:$0xff]
      %v453 = vld [vmem:[#allocation2 + $0xc0] sm:$0xff]
      %v454 = vld [vmem:[#allocation2 + $0xc8] sm:$0xff]
      %v455 = vld [vmem:[#allocation2 + $0xd0] sm:$0xff]
      %v456 = vld [vmem:[%s268] sm:$0xff]
      %v457 = vld [vmem:[%s268 + $0x8] sm:$0xff]
      %v458 = vld [vmem:[%s268 + $0x10] sm:$0xff]
      %v459 = vld [vmem:[%s268 + $0x18] sm:$0xff]
      %461 = vset.pattern.permute.xlu0 0
      %462 = vperm.xlu0 %461, %v456
      %v463 = vpop.permute.xlu0 %462
      %466 = vset.pattern.permute.xlu0 0
      %467 = vperm.xlu0 %466, %v457
      %v468 = vpop.permute.xlu0 %467
      %471 = vset.pattern.permute.xlu0 0
      %472 = vperm.xlu0 %471, %v458
      %v473 = vpop.permute.xlu0 %472
      %476 = vset.pattern.permute.xlu0 0
      %477 = vperm.xlu0 %476, %v459
      %v478 = vpop.permute.xlu0 %477
      %vm480 = vcmask 588800
      %v482 = vsel %vm480, %v425, 0
      %v485 = vsel %vm480, %v426, 0
      %v488 = vsel %vm480, %v427, 0
      %v491 = vsel %vm480, %v428, 0
      %493 = vmatpush.msra.mxu0 0.0
      %494 = vmatpush.msra.mxu0 0.0
      %495 = vmatpush.msra.mxu0 0.0
      %496 = vmatpush.msra.mxu0 0.0
      %497 = vmatpush.msra.mxu0 0.0
      %498 = vmatpush.msra.mxu0 0.0
      %499 = vmatpush.msra.mxu0 0.0
      %500 = vmatpush.msra.mxu0 %v453
      %501 = vmatpush.msra.mxu0 %v450
      %502 = vmatpush.msra.mxu0 %v447
      %503 = vmatpush.msra.mxu0 %v444
      %504 = vmatpush.msra.mxu0 %v441
      %505 = vmatpush.msra.mxu0 %v438
      %506 = vmatpush.msra.mxu0 %v435
      %507 = vmatpush.msra.mxu0 %v432
      %508 = vmatpush.msra.mxu0 %v429
      %509 = vmatmul.f32.gmra.mxu0 %v482
      %v510 = vpop.f32.mrf.mxu0
      %v511 = vadd.f32 %v463, %v510
      %512 = vmatmul.f32.gmra.mxu0 %v485
      %v513 = vpop.f32.mrf.mxu0
      %v514 = vadd.f32 %v468, %v513
      %515 = vmatmul.f32.gmra.mxu0 %v488
      %v516 = vpop.f32.mrf.mxu0
      %v517 = vadd.f32 %v473, %v516
      %518 = vmatmul.f32.gmra.mxu0 %v491
      %v519 = vpop.f32.mrf.mxu0
      %v520 = vadd.f32 %v478, %v519
      %521 = vdwg.mxu0
      %522 = vmatpush.msra.mxu0 0.0
      %523 = vmatpush.msra.mxu0 0.0
      %524 = vmatpush.msra.mxu0 0.0
      %525 = vmatpush.msra.mxu0 0.0
      %526 = vmatpush.msra.mxu0 0.0
      %527 = vmatpush.msra.mxu0 0.0
      %528 = vmatpush.msra.mxu0 0.0
      %529 = vmatpush.msra.mxu0 %v454
      %530 = vmatpush.msra.mxu0 %v451
      %531 = vmatpush.msra.mxu0 %v448
      %532 = vmatpush.msra.mxu0 %v445
      %533 = vmatpush.msra.mxu0 %v442
      %534 = vmatpush.msra.mxu0 %v439
      %535 = vmatpush.msra.mxu0 %v436
      %536 = vmatpush.msra.mxu0 %v433
      %537 = vmatpush.msra.mxu0 %v430
      %538 = vmatmul.f32.gmra.mxu0 %v482
      %v539 = vpop.f32.mrf.mxu0
      %v540 = vadd.f32 %v463, %v539
      %541 = vmatmul.f32.gmra.mxu0 %v485
      %v542 = vpop.f32.mrf.mxu0
      %v543 = vadd.f32 %v468, %v542
      %544 = vmatmul.f32.gmra.mxu0 %v488
      %v545 = vpop.f32.mrf.mxu0
      %v546 = vadd.f32 %v473, %v545
      %547 = vmatmul.f32.gmra.mxu0 %v491
      %v548 = vpop.f32.mrf.mxu0
      %v549 = vadd.f32 %v478, %v548
      %550 = vdwg.mxu0
      %551 = vmatpush.msra.mxu0 0.0
      %552 = vmatpush.msra.mxu0 0.0
      %553 = vmatpush.msra.mxu0 0.0
      %554 = vmatpush.msra.mxu0 0.0
      %555 = vmatpush.msra.mxu0 0.0
      %556 = vmatpush.msra.mxu0 0.0
      %557 = vmatpush.msra.mxu0 0.0
      %558 = vmatpush.msra.mxu0 %v455
      %559 = vmatpush.msra.mxu0 %v452
      %560 = vmatpush.msra.mxu0 %v449
      %561 = vmatpush.msra.mxu0 %v446
      %562 = vmatpush.msra.mxu0 %v443
      %563 = vmatpush.msra.mxu0 %v440
      %564 = vmatpush.msra.mxu0 %v437
      %565 = vmatpush.msra.mxu0 %v434
      %566 = vmatpush.msra.mxu0 %v431
      %567 = vmatmul.f32.gmra.mxu0 %v482
      %v568 = vpop.f32.mrf.mxu0
      %v569 = vadd.f32 %v463, %v568
      %570 = vmatmul.f32.gmra.mxu0 %v485
      %v571 = vpop.f32.mrf.mxu0
      %v572 = vadd.f32 %v468, %v571
      %573 = vmatmul.f32.gmra.mxu0 %v488
      %v574 = vpop.f32.mrf.mxu0
      %v575 = vadd.f32 %v473, %v574
      %576 = vmatmul.f32.gmra.mxu0 %v491
      %v577 = vpop.f32.mrf.mxu0
      %v578 = vadd.f32 %v478, %v577
      %579 = vdwg.mxu0
      %580 = vst [vmem:[%s279] sm:$0xff] %v511
      %581 = vst [vmem:[%s279 + $0x8] sm:$0xff] %v540
      %vm582 = vcmask 261120
      %583 = vst.msk [vmem:[%s279 + $0x10] sm:$0xff] %vm582, %v569
      %584 = vst [vmem:[%s279 + $0x18] sm:$0xff] %v514
      %585 = vst [vmem:[%s279 + $0x20] sm:$0xff] %v543
      %586 = vst.msk [vmem:[%s279 + $0x28] sm:$0xff] %vm582, %v572
      %587 = vst [vmem:[%s279 + $0x30] sm:$0xff] %v517
      %588 = vst [vmem:[%s279 + $0x38] sm:$0xff] %v546
      %589 = vst.msk [vmem:[%s279 + $0x40] sm:$0xff] %vm582, %v575
      %590 = vst [vmem:[%s279 + $0x48] sm:$0xff] %v520
      %591 = vst [vmem:[%s279 + $0x50] sm:$0xff] %v549
      %592 = vst.msk [vmem:[%s279 + $0x58] sm:$0xff] %vm582, %v578
      %v593 = vlaneseq
      %v594 = vand.u32 %v593, 127
      %v595 = vadd.s32 %v594, 128
      %v596 = vadd.s32 %v594, 256
      %vm597 = vcmp.lt.s32.totalorder %v594, 0
      %v598 = vsub.s32 0, %v594
      %v599 = vsel %vm597, %v598, %v594
      %v600 = vand.u32 %v599, 65535
      %v601 = vshrl.u32 %v599, 16
      %v603 = vmul.u32 %v600, 14564
      %v604 = vmul.u32 %v600, 58254
      %v605 = vmul.u32 %v601, 14564
      %v606 = vmul.u32 %v601, 58254
      %v607 = vshll.u32 %v604, 16
      %v608 = vshrl.u32 %v604, 16
      %v609 = vshll.u32 %v605, 16
      %v610 = vshrl.u32 %v605, 16
      %vm611 = vc.u32 %v603, %v607
      %v612 = vsel %vm611, 1, 0
      %v613 = vadd.s32 %v603, %v607
      %v614 = vadd.s32 %v606, %v612
      %vm615 = vc.u32 %v613, %v609
      %v616 = vsel %vm615, 1, 0
      %v617 = vadd.s32 %v613, %v609
      %v618 = vadd.s32 %v614, %v616
      %v619 = vadd.s32 %v618, %v608
      %v620 = vadd.s32 %v619, %v610
      %v621 = vshrl.u32 %v620, 4
      %v622 = vmul.u32 %v621, 18
      %v623 = vsub.s32 %v599, %v622
      %v624 = vsub.s32 0, %v623
      %v625 = vsel %vm597, %v624, %v623
      %vm626 = vcmp.lt.s32.totalorder %v595, 0
      %v627 = vsub.s32 0, %v595
      %v628 = vsel %vm626, %v627, %v595
      %v629 = vand.u32 %v628, 65535
      %v630 = vshrl.u32 %v628, 16
      %v632 = vmul.u32 %v629, 14564
      %v633 = vmul.u32 %v629, 58254
      %v634 = vmul.u32 %v630, 14564
      %v635 = vmul.u32 %v630, 58254
      %v636 = vshll.u32 %v633, 16
      %v637 = vshrl.u32 %v633, 16
      %v638 = vshll.u32 %v634, 16
      %v639 = vshrl.u32 %v634, 16
      %vm640 = vc.u32 %v632, %v636
      %v641 = vsel %vm640, 1, 0
      %v642 = vadd.s32 %v632, %v636
      %v643 = vadd.s32 %v635, %v641
      %vm644 = vc.u32 %v642, %v638
      %v645 = vsel %vm644, 1, 0
      %v646 = vadd.s32 %v642, %v638
      %v647 = vadd.s32 %v643, %v645
      %v648 = vadd.s32 %v647, %v637
      %v649 = vadd.s32 %v648, %v639
      %v650 = vshrl.u32 %v649, 4
      %v651 = vmul.u32 %v650, 18
      %v652 = vsub.s32 %v628, %v651
      %v653 = vsub.s32 0, %v652
      %v654 = vsel %vm626, %v653, %v652
      %vm655 = vcmp.lt.s32.totalorder %v596, 0
      %v656 = vsub.s32 0, %v596
      %v657 = vsel %vm655, %v656, %v596
      %v658 = vand.u32 %v657, 65535
      %v659 = vshrl.u32 %v657, 16
      %v661 = vmul.u32 %v658, 14564
      %v662 = vmul.u32 %v658, 58254
      %v663 = vmul.u32 %v659, 14564
      %v664 = vmul.u32 %v659, 58254
      %v665 = vshll.u32 %v662, 16
      %v666 = vshrl.u32 %v662, 16
      %v667 = vshll.u32 %v663, 16
      %v668 = vshrl.u32 %v663, 16
      %vm669 = vc.u32 %v661, %v665
      %v670 = vsel %vm669, 1, 0
      %v671 = vadd.s32 %v661, %v665
      %v672 = vadd.s32 %v664, %v670
      %vm673 = vc.u32 %v671, %v667
      %v674 = vsel %vm673, 1, 0
      %v675 = vadd.s32 %v671, %v667
      %v676 = vadd.s32 %v672, %v674
      %v677 = vadd.s32 %v676, %v666
      %v678 = vadd.s32 %v677, %v668
      %v679 = vshrl.u32 %v678, 4
      %v680 = vmul.u32 %v679, 18
      %v681 = vsub.s32 %v657, %v680
      %v682 = vsub.s32 0, %v681
      %v683 = vsel %vm655, %v682, %v681
      %vm684 = vcmp.ne.s32.totalorder %v625, 0
      %vm685 = vcmp.ne.s32.totalorder %v654, 0
      %vm686 = vcmp.ne.s32.totalorder %v683, 0
      %vm687 = vcmp.lt.s32.totalorder %v625, 0
      %vm688 = vcmp.lt.s32.totalorder %v654, 0
      %vm689 = vcmp.lt.s32.totalorder %v683, 0
      %vm690 = vmand %vm687, %vm684
      %vm691 = vmand %vm688, %vm685
      %vm692 = vmand %vm689, %vm686
      %v693 = vadd.s32 %v625, 18
      %v694 = vadd.s32 %v654, 18
      %v695 = vadd.s32 %v683, 18
      %v696 = vsel %vm690, %v693, %v625
      %v697 = vsel %vm691, %v694, %v654
      %v698 = vsel %vm692, %v695, %v683
      %vm699 = vcmp.lt.s32.totalorder %v696, 16
      %vm700 = vcmp.lt.s32.totalorder %v697, 16
      %vm701 = vcmp.lt.s32.totalorder %v698, 16
      %v702 = vsel %vm699, 1, 0
      %v703 = vsel %vm700, 1, 0
      %v704 = vsel %vm701, 1, 0
      %v705 = vcvt.s32.f32 %v702
      %v706 = vcvt.s32.f32 %v703
      %v707 = vcvt.s32.f32 %v704
      %v708 = vmul.f32 %v511, %v705
      %v709 = vmul.f32 %v540, %v706
      %v710 = vmul.f32 %v569, %v707
      %v711 = vmul.f32 %v514, %v705
      %v712 = vmul.f32 %v543, %v706
      %v713 = vmul.f32 %v572, %v707
      %v714 = vmul.f32 %v517, %v705
      %v715 = vmul.f32 %v546, %v706
      %v716 = vmul.f32 %v575, %v707
      %v717 = vmul.f32 %v520, %v705
      %v718 = vmul.f32 %v549, %v706
      %v719 = vmul.f32 %v578, %v707
      %v720 = vadd.f32 %v708, %v709
      %v721 = vsel %vm582, %v710, 0.0
      %v722 = vadd.f32 %v720, %v721
      %723 = vadd.xlane.f32.xlu0 %v722
      %v724 = vpop.xlane.xlu0 %723
      %v725 = vadd.f32 %v711, %v712
      %v726 = vsel %vm582, %v713, 0.0
      %v727 = vadd.f32 %v725, %v726
      %728 = vadd.xlane.f32.xlu0 %v727
      %v729 = vpop.xlane.xlu0 %728
      %v730 = vadd.f32 %v714, %v715
      %v731 = vsel %vm582, %v716, 0.0
      %v732 = vadd.f32 %v730, %v731
      %733 = vadd.xlane.f32.xlu0 %v732
      %v734 = vpop.xlane.xlu0 %733
      %v735 = vadd.f32 %v717, %v718
      %v736 = vsel %vm582, %v719, 0.0
      %v737 = vadd.f32 %v735, %v736
      %738 = vadd.xlane.f32.xlu0 %v737
      %v739 = vpop.xlane.xlu0 %738
      %v740 = vmul.f32 %v708, %v511
      %v741 = vmul.f32 %v709, %v540
      %v742 = vmul.f32 %v710, %v569
      %v743 = vmul.f32 %v711, %v514
      %v744 = vmul.f32 %v712, %v543
      %v745 = vmul.f32 %v713, %v572
      %v746 = vmul.f32 %v714, %v517
      %v747 = vmul.f32 %v715, %v546
      %v748 = vmul.f32 %v716, %v575
      %v749 = vmul.f32 %v717, %v520
      %v750 = vmul.f32 %v718, %v549
      %v751 = vmul.f32 %v719, %v578
      %v752 = vadd.f32 %v740, %v741
      %v753 = vsel %vm582, %v742, 0.0
      %v754 = vadd.f32 %v752, %v753
      %755 = vadd.xlane.f32.xlu0 %v754
      %v756 = vpop.xlane.xlu0 %755
      %v757 = vadd.f32 %v743, %v744
      %v758 = vsel %vm582, %v745, 0.0
      %v759 = vadd.f32 %v757, %v758
      %760 = vadd.xlane.f32.xlu0 %v759
      %v761 = vpop.xlane.xlu0 %760
      %v762 = vadd.f32 %v746, %v747
      %v763 = vsel %vm582, %v748, 0.0
      %v764 = vadd.f32 %v762, %v763
      %765 = vadd.xlane.f32.xlu0 %v764
      %v766 = vpop.xlane.xlu0 %765
      %v767 = vadd.f32 %v749, %v750
      %v768 = vsel %vm582, %v751, 0.0
      %v769 = vadd.f32 %v767, %v768
      %770 = vadd.xlane.f32.xlu0 %v769
      %v771 = vpop.xlane.xlu0 %770
      %vm772 = vcmask 7168
      %v773 = vsel %vm772, %v724, %v756
      %v774 = vsel %vm772, %v729, %v761
      %v775 = vsel %vm772, %v734, %v766
      %v776 = vsel %vm772, %v739, %v771
      %vm777 = vcmask 15360
      %778 = vst.msk [vmem:[%s289] sm:$0xff] %vm777, %v773
      %779 = vst.msk [vmem:[%s289 + $0x8] sm:$0xff] %vm777, %v774
      %780 = vst.msk [vmem:[%s289 + $0x10] sm:$0xff] %vm777, %v775
      %781 = vst.msk [vmem:[%s289 + $0x18] sm:$0xff] %vm777, %v776
      %s782 = smul.u32 4, %s21
      %p783 = scmp.lt.s32.totalorder %s20, 1
      %s784 = scalar_select %p783, %s20, 1
      %p785 = scmp.lt.s32.totalorder %s782, 3
      %s786 = scalar_select %p785, %s782, 3
      %s787 = smul.addr %s786, 3
      %s788 = smul.addr %s784, 12
      %s789 = sadd.s32 %s787, %s788
      %s790 = smul.addr %s789, 8
      %s791 = scalar_lea.vmem %s3, %s790
      %s792 = smul.u32 4, %s21
      %p793 = scmp.lt.s32.totalorder %s20, 1
      %s794 = scalar_select %p793, %s20, 1
      %p795 = scmp.lt.s32.totalorder %s792, 3
      %s796 = scalar_select %p795, %s792, 3
      %s797 = smul.addr %s794, 4
      %s798 = sadd.s32 %s796, %s797
      %s799 = smul.addr %s798, 8
      %s800 = scalar_lea.vmem %s4, %s799
      // Predicated region
      $region37: #{up_conv_forward.2} parent=31 // pred_check
        %p801 = pneg %p126
      $region38: #{up_conv_forward.2} parent=31 // pred_check_branch
        %803 = sbr.rel (%p801) target = $region40
      $region39: #{up_conv_forward.2} parent=31 // pred_region
        %s804 = smul.u32 4, %s21
      $region40: #{up_conv_forward.2} parent=31 // pred_fallthru
        _
      // Predicated region
      $region41: #{up_conv_forward.2} parent=31 // pred_check
        %p805 = pneg %p154
      $region42: #{up_conv_forward.2} parent=31 // pred_check_branch
        %807 = sbr.rel (%p805) target = $region44
      $region43: #{up_conv_forward.2} parent=31 // pred_region
        %s808 = smul.u32 4, %s21
      $region44: #{up_conv_forward.2} parent=31 // pred_fallthru
        _
    $region32: #{up_conv_forward.2} parent=5 // pred_fallthru
      _
    %p809 = scmp.le.s32.totalorder 2, %s11
    // Predicated region
    $region45: #{up_conv_forward.2} parent=5 // pred_check
      %p810 = pneg %p809
    $region46: #{up_conv_forward.2} parent=5 // pred_check_branch
      %812 = sbr.rel (%p810) target = $region48
    $region47: #{up_conv_forward.2} parent=5 // pred_region
      %s813 = ssub.s32 %s11, 2
      // Predicated region
      $region49: #{up_conv_forward.2} parent=47 // pred_check
        %p814 = pneg %p132
      $region50: #{up_conv_forward.2} parent=47 // pred_check_branch
        %816 = sbr.rel (%p814) target = $region52
      $region51: #{up_conv_forward.2} parent=47 // pred_region
        %s817 = smul.u32 4, %s23
        %p818 = scmp.lt.s32.totalorder %s22, 1
        %s819 = scalar_select %p818, %s22, 1
        %p820 = scmp.lt.s32.totalorder %s817, 3
        %s821 = scalar_select %p820, %s817, 3
        %s822 = smul.addr %s821, 3
        %s823 = smul.addr %s819, 12
        %s824 = sadd.s32 %s822, %s823
        %s825 = smul.addr %s824, 8
        %s826 = scalar_lea.vmem %s3, %s825
      $region52: #{up_conv_forward.2} parent=47 // pred_fallthru
        _
      // Predicated region
      $region53: #{up_conv_forward.2} parent=47 // pred_check
        %p827 = pneg %p160
      $region54: #{up_conv_forward.2} parent=47 // pred_check_branch
        %829 = sbr.rel (%p827) target = $region56
      $region55: #{up_conv_forward.2} parent=47 // pred_region
        %s830 = smul.u32 4, %s23
        %p831 = scmp.lt.s32.totalorder %s22, 1
        %s832 = scalar_select %p831, %s22, 1
        %p833 = scmp.lt.s32.totalorder %s830, 3
        %s834 = scalar_select %p833, %s830, 3
        %s835 = smul.addr %s832, 4
        %s836 = sadd.s32 %s834, %s835
        %s837 = smul.addr %s836, 8
        %s838 = scalar_lea.vmem %s4, %s837
      $region56: #{up_conv_forward.2} parent=47 // pred_fallthru
        _
    $region48: #{up_conv_forward.2} parent=5 // pred_fallthru
      _
  $region6: #{up_conv_forward.2} parent=0 // loop_footer
    %s15 = sadd.s32 1, %s11
  $region7: #{up_conv_forward.2} parent=0 // loop_footer_branch
    %10 = sbr.rel target = $region3
  $region8: #{up_conv_forward.2} parent=0 // loop_exit
    _

</llo_original>
